<compile_context>
chip_gen: v6e
topology: v6e:2x2x1
jax: 0.10.0
libtpu: 0.0.40
codegen_flags: <defaults>
</compile_context>

<pallas_src>
import functools

import jax
import jax.numpy as jnp
import numpy as np
from jax.experimental import pallas as pl
from jax.experimental.pallas import tpu as pltpu


def _conv_adapter_kernel(x_ref, w1_ref, w2_ref, o_ref, xpad_ref, *,
                         k, stride, padding, Ho, Wo, mxu_dtype):
    # x_ref   : (1, H, W, Cin)         NHWC input block (one image per step)
    # w1_ref  : (k*k, Cin, width)      block-structured grouped-conv1 weight
    # w2_ref  : (outplanes, width)     1x1 conv2 weight with `se` pre-folded
    # o_ref   : (1, outplanes, Ho*Wo)  lane-dense output (flattened spatial)
    # xpad_ref: (Hp, Wp, Cin) f32      VMEM scratch holding the padded image
    H, W, cin = x_ref.shape[1], x_ref.shape[2], x_ref.shape[3]

    # ---- zero-pad into VMEM scratch (no wrapper-side jnp.pad HBM pass) ----
    if padding > 0:
        xpad_ref[...] = jnp.zeros(xpad_ref.shape, xpad_ref.dtype)
    xpad_ref[pl.ds(padding, H), pl.ds(padding, W), :] = (
        x_ref[0].astype(xpad_ref.dtype))

    # ---- conv1 (grouped) as k*k MXU matmuls with f32 accumulation ----
    acc = None
    for kh in range(k):
        for kw in range(k):
            if stride == 1:
                win = xpad_ref[pl.ds(kh, Ho), pl.ds(kw, Wo), :]
            else:
                span_h = (Ho - 1) * stride + 1
                span_w = (Wo - 1) * stride + 1
                full = xpad_ref[pl.ds(kh, span_h), pl.ds(kw, span_w), :]
                win = jax.lax.slice(full, (0, 0, 0), (span_h, span_w, cin),
                                    (stride, stride, 1))
            win2 = win.reshape(Ho * Wo, cin).astype(mxu_dtype)
            part = jnp.dot(win2, w1_ref[kh * k + kw],
                           preferred_element_type=jnp.float32)  # (Ho*Wo, width)
            acc = part if acc is None else acc + part

    # ---- ReLU ----
    mid = jnp.maximum(acc, 0.0).astype(mxu_dtype)                # (Ho*Wo, width)

    # ---- conv2 (1x1) + se, emitted lane-dense: (outplanes, Ho*Wo) ----
    # Contract the `width` (minor) dims of both operands: A @ B^T on the MXU.
    out = jax.lax.dot_general(
        w2_ref[...], mid,
        dimension_numbers=(((1,), (1,)), ((), ())),
        preferred_element_type=jnp.float32)                      # (outplanes, Ho*Wo)
    o_ref[0] = out.astype(o_ref.dtype)


def conv_adapter_forward(x_nchw, w1_t, w2_t, se, *, kernel_size=1, padding=1,
                         stride=1, mxu_dtype=jnp.bfloat16):
    """ConvAdapter.forward.

    x_nchw: (N, inplanes, H, W)             (PyTorch NCHW)
    w1_t  : (width, inplanes//width, k, k)  == conv1.weight (groups=width)
    w2_t  : (outplanes, width, 1, 1)        == conv2.weight
    se    : (1, outplanes, 1, 1)
    Returns NCHW output matching the PyTorch module.
    """
    N, Cin, H, W = x_nchw.shape
    width, cpg, k, k2 = w1_t.shape
    assert k == k2 == kernel_size
    assert Cin == width * cpg, "inplanes must be divisible by width (groups)"
    outplanes = w2_t.shape[0]
    Hp, Wp = H + 2 * padding, W + 2 * padding
    Ho = (Hp - k) // stride + 1
    Wo = (Wp - k) // stride + 1

    # NHWC for the kernel: channels on the lane axis feed the conv1 matmul.
    # (Channel order is unchanged -- grouping is encoded in the block weight.)
    x_nhwc = jnp.transpose(x_nchw, (0, 2, 3, 1))

    # Block-structured conv1 weight:
    #   w1_mat[kh*k + kw, g*cpg + c, g2] = w1_t[g, c, kh, kw] if g == g2 else 0
    # Off-group entries are exact zeros (multiplication by an exact 0/1 eye).
    eye_g = jnp.eye(width, dtype=w1_t.dtype)                       # (g, g2)
    w1_perm = jnp.transpose(w1_t, (2, 3, 0, 1))                    # (k, k, g, c)
    w1_mat = (w1_perm[:, :, :, :, None] * eye_g[:, None, :]
              ).reshape(k * k, Cin, width).astype(mxu_dtype)

    # 1x1 conv weight with the se channel scale folded in (rides on the MXU).
    w2_mat = (w2_t[:, :, 0, 0] * se.reshape(outplanes, 1)).astype(mxu_dtype)

    kernel = functools.partial(
        _conv_adapter_kernel, k=k, stride=stride, padding=padding,
        Ho=Ho, Wo=Wo, mxu_dtype=mxu_dtype)

    out_flat = pl.pallas_call(
        kernel,
        out_shape=jax.ShapeDtypeStruct((N, outplanes, Ho * Wo), x_nchw.dtype),
        grid_spec=pltpu.PrefetchScalarGridSpec(
            num_scalar_prefetch=0,
            # One image per step keeps >=2 parallel grid steps for v7x's 2 TCs.
            grid=(N,),
            in_specs=[
                pl.BlockSpec((1, H, W, Cin), lambda n: (n, 0, 0, 0)),
                pl.BlockSpec((k * k, Cin, width), lambda n: (0, 0, 0)),
                pl.BlockSpec((outplanes, width), lambda n: (0, 0)),
            ],
            out_specs=pl.BlockSpec((1, outplanes, Ho * Wo), lambda n: (n, 0, 0)),
            scratch_shapes=[pltpu.VMEM((Hp, Wp, Cin), jnp.float32)],
        ),
        compiler_params=pltpu.CompilerParams(
            dimension_semantics=("parallel",),
            vmem_limit_bytes=32 * 1024 * 1024),
    )(x_nhwc, w1_mat, w2_mat)

    # Lane-dense kernel output -> NCHW is a free reshape (no transpose pass).
    return out_flat.reshape(N, outplanes, Ho, Wo)


def conv_adapter_reference(x, w1_t, w2_t, se, *, kernel_size=1, padding=1, stride=1):
    """Pure-JAX reference mirroring the PyTorch forward (for validation)."""
    width = w1_t.shape[0]
    out = jax.lax.conv_general_dilated(
        x, w1_t, window_strides=(stride, stride),
        padding=[(padding, padding), (padding, padding)],
        dimension_numbers=("NCHW", "OIHW", "NCHW"),
        feature_group_count=width,
        precision=jax.lax.Precision.HIGHEST)
    out = jnp.maximum(out, 0.0)
    out = jax.lax.conv_general_dilated(
        out, w2_t, window_strides=(1, 1), padding="VALID",
        dimension_numbers=("NCHW", "OIHW", "NCHW"),
        precision=jax.lax.Precision.HIGHEST)
    return out * se


if __name__ == "__main__":
    key = jax.random.PRNGKey(0)
    k_x, k_w1, k_w2, k_se = jax.random.split(key, 4)

    # ConvAdapter(inplanes=8, outplanes=8, width=4), defaults padding=1, stride=1.
    N, inplanes, H, W = 2, 8, 16, 16
    width, outplanes = 4, 8
    cpg = inplanes // width

    x = jax.random.normal(k_x, (N, inplanes, H, W), jnp.float32)
    w1_k1 = jax.random.normal(k_w1, (width, cpg, 1, 1), jnp.float32) * 0.1
    w1_k3 = jax.random.normal(k_w1, (width, cpg, 3, 3), jnp.float32) * 0.1
    w2 = jax.random.normal(k_w2, (outplanes, width, 1, 1), jnp.float32) * 0.1
    # NOTE: the module initializes `se` to zeros; use deterministic nonzero
    # values so the test is non-trivial (forward semantics unchanged).
    se = jax.random.normal(k_se, (1, outplanes, 1, 1), jnp.float32)

    for w1_i, ksz in ((w1_k1, 1), (w1_k3, 3)):
        ref = conv_adapter_reference(x, w1_i, w2, se,
                                     kernel_size=ksz, padding=1, stride=1)

        # Default bf16-MXU path (performance configuration).
        out_bf16 = jax.block_until_ready(
            conv_adapter_forward(x, w1_i, w2, se,
                                 kernel_size=ksz, padding=1, stride=1))
        assert out_bf16.shape == ref.shape
        assert np.allclose(np.asarray(out_bf16), np.asarray(ref),
                           rtol=2e-2, atol=5e-3), f"bf16 path mismatch (k={ksz})"

        # f32-MXU path: tight structural check of the kernel.
        out_f32 = jax.block_until_ready(
            conv_adapter_forward(x, w1_i, w2, se,
                                 kernel_size=ksz, padding=1, stride=1,
                                 mxu_dtype=jnp.float32))
        assert out_f32.shape == ref.shape
        assert np.allclose(np.asarray(out_f32), np.asarray(ref),
                           rtol=1e-3, atol=1e-3), f"f32 path mismatch (k={ksz})"

    print("KERNEL_OK")
</pallas_src>

<mosaic_0001>
module attributes {stable_mosaic.version = 11 : i64} {
  func.func @_conv_adapter_kernel(%arg0: i32, %arg1: memref<1x16x16x8xf32, #tpu.memory_space<vmem>>, %arg2: memref<1x8x4xbf16, #tpu.memory_space<vmem>>, %arg3: memref<8x4xbf16, #tpu.memory_space<vmem>>, %arg4: memref<1x8x324xf32, #tpu.memory_space<vmem>>, %arg5: memref<18x18x8xf32, #tpu.memory_space<vmem>>) attributes {dimension_semantics = [#tpu.dimension_semantics<parallel>], iteration_bounds = array<i64: 2>, scalar_prefetch = 0 : i64, scratch_operands = 1 : i64, tpu.core_type = #tpu.core_type<tc>, window_params = [{transform_indices = @transform_0, window_bounds = array<i64: 1, 16, 16, 8>}, {pipeline_mode = #tpu.pipeline_mode<synchronous>, transform_indices = @transform_1, window_bounds = array<i64: 1, 8, 4>}, {pipeline_mode = #tpu.pipeline_mode<synchronous>, transform_indices = @transform_2, window_bounds = array<i64: 8, 4>}, {transform_indices = @transform_3, window_bounds = array<i64: 1, 8, 324>}]} {
    %cst = arith.constant 0.000000e+00 : f32
    %0 = vector.broadcast %cst : f32 to vector<18x18x8xf32>
    %c0 = arith.constant 0 : index
    %c0_0 = arith.constant 0 : index
    %c0_1 = arith.constant 0 : index
    %1 = vector.load %arg5[%c0, %c0_0, %c0_1] : memref<18x18x8xf32, #tpu.memory_space<vmem>>, vector<18x18x8xf32>
    tpu.vector_store %arg5[%c0, %c0_0, %c0_1], %0 {strides = array<i32>} : memref<18x18x8xf32, #tpu.memory_space<vmem>>, vector<18x18x8xf32>,
    %c0_2 = arith.constant 0 : index
    %c0_3 = arith.constant 0 : index
    %c0_4 = arith.constant 0 : index
    %c0_5 = arith.constant 0 : index
    %2 = vector.load %arg1[%c0_2, %c0_3, %c0_4, %c0_5] : memref<1x16x16x8xf32, #tpu.memory_space<vmem>>, vector<1x16x16x8xf32>
    %3 = vector.shape_cast %2 : vector<1x16x16x8xf32> to vector<16x16x8xf32>
    %c1 = arith.constant 1 : index
    %c1_6 = arith.constant 1 : index
    %c0_7 = arith.constant 0 : index
    %4 = vector.load %arg5[%c1, %c1_6, %c0_7] : memref<18x18x8xf32, #tpu.memory_space<vmem>>, vector<16x16x8xf32>
    tpu.vector_store %arg5[%c1, %c1_6, %c0_7], %3 {strides = array<i32>} : memref<18x18x8xf32, #tpu.memory_space<vmem>>, vector<16x16x8xf32>,
    %c0_8 = arith.constant 0 : index
    %c0_9 = arith.constant 0 : index
    %c0_10 = arith.constant 0 : index
    %5 = vector.load %arg5[%c0_8, %c0_9, %c0_10] : memref<18x18x8xf32, #tpu.memory_space<vmem>>, vector<18x18x8xf32>
    %6 = vector.shape_cast %5 : vector<18x18x8xf32> to vector<324x8xf32>
    %7 = arith.truncf %6 : vector<324x8xf32> to vector<324x8xbf16>
    %c0_11 = arith.constant 0 : index
    %c0_12 = arith.constant 0 : index
    %c0_13 = arith.constant 0 : index
    %8 = vector.load %arg2[%c0_11, %c0_12, %c0_13] : memref<1x8x4xbf16, #tpu.memory_space<vmem>>, vector<1x8x4xbf16>
    %9 = vector.shape_cast %8 : vector<1x8x4xbf16> to vector<8x4xbf16>
    %cst_14 = arith.constant dense<0.000000e+00> : vector<324x4xf32>
    %10 = tpu.matmul %7, %9, %cst_14 {dimension_numbers = #tpu.dot_dimension_numbers<[1], [0], [0], [1], [0, 0, 1, 1], [], []>} : vector<324x8xbf16>, vector<8x4xbf16>, vector<324x4xf32> -> vector<324x4xf32>
    %cst_15 = arith.constant 0.000000e+00 : f32
    %11 = vector.broadcast %cst_15 : f32 to vector<324x4xf32>
    %12 = arith.maximumf %10, %11 : vector<324x4xf32>
    %13 = arith.truncf %12 : vector<324x4xf32> to vector<324x4xbf16>
    %c0_16 = arith.constant 0 : index
    %c0_17 = arith.constant 0 : index
    %14 = vector.load %arg3[%c0_16, %c0_17] : memref<8x4xbf16, #tpu.memory_space<vmem>>, vector<8x4xbf16>
    %cst_18 = arith.constant dense<0.000000e+00> : vector<8x324xf32>
    %15 = tpu.matmul %14, %13, %cst_18 {dimension_numbers = #tpu.dot_dimension_numbers<[1], [1], [0], [0], [0, 0, 1, 0], [], []>} : vector<8x4xbf16>, vector<324x4xbf16>, vector<8x324xf32> -> vector<8x324xf32>
    %c0_19 = arith.constant 0 : index
    %c0_20 = arith.constant 0 : index
    %c0_21 = arith.constant 0 : index
    %16 = vector.load %arg4[%c0_19, %c0_20, %c0_21] : memref<1x8x324xf32, #tpu.memory_space<vmem>>, vector<1x8x324xf32>
    %17 = vector.shape_cast %16 : vector<1x8x324xf32> to vector<8x324xf32>
    %18 = vector.shape_cast %15 : vector<8x324xf32> to vector<1x8x324xf32>
    tpu.vector_store %arg4[%c0_19, %c0_20, %c0_21], %18 {strides = array<i32>} : memref<1x8x324xf32, #tpu.memory_space<vmem>>, vector<1x8x324xf32>,
    return
  }
  func.func @transform_0(%arg0: i32) -> (i32, i32, i32, i32) {
    %c0_i32 = arith.constant 0 : i32
    %c0_i32_0 = arith.constant 0 : i32
    %c0_i32_1 = arith.constant 0 : i32
    %c0_i32_2 = arith.constant 0 : i32
    return %arg0, %c0_i32, %c0_i32_0, %c0_i32_1 : i32, i32, i32, i32
  }
  func.func @transform_1(%arg0: i32) -> (i32, i32, i32) {
    %c0_i32 = arith.constant 0 : i32
    %c0_i32_0 = arith.constant 0 : i32
    %c0_i32_1 = arith.constant 0 : i32
    %c0_i32_2 = arith.constant 0 : i32
    return %c0_i32, %c0_i32_0, %c0_i32_1 : i32, i32, i32
  }
  func.func @transform_2(%arg0: i32) -> (i32, i32) {
    %c0_i32 = arith.constant 0 : i32
    %c0_i32_0 = arith.constant 0 : i32
    %c0_i32_1 = arith.constant 0 : i32
    return %c0_i32, %c0_i32_0 : i32, i32
  }
  func.func @transform_3(%arg0: i32) -> (i32, i32, i32) {
    %c0_i32 = arith.constant 0 : i32
    %c0_i32_0 = arith.constant 0 : i32
    %c0_i32_1 = arith.constant 0 : i32
    return %arg0, %c0_i32, %c0_i32_0 : i32, i32, i32
  }
}

</mosaic_0001>

<llo_original>
// kernel: tpu_custom_call.1
$region0: #{tpu_custom_call.1}
  #allocation0 [shape = 'u32[]', space=smem, size = 0x4, offset = 0x4, fixed_abs, tag = 'smem constant byte address 0x4 - core index']
  #allocation1 [shape = 'u32[144,128]{1,0:T(1,128)}', space=vmem, size = 0x12000, scoped, tag = 'internal scratch']
  #allocation2 [shape = 'f32[18,18,8]{2,1,0:T(8,128)}', space=vmem, size = 0x36000, scoped, tag = 'scratch operand']
  %s0 = inlined_call_operand.vmem [shape: f32[2,16,16,8], index: 0, kind: input, shape index: {}]
  %s1 = inlined_call_operand.vmem [shape: bf16[1,8,4], index: 1, kind: input, shape index: {}]
  %s2 = inlined_call_operand.vmem [shape: bf16[8,4], index: 2, kind: input, shape index: {}]
  %s3 = inlined_call_operand.hbm [shape: f32[2,8,324], index: 3, kind: output, shape index: {}]
  %s4 = sld [smem:[#allocation0]]
  $region45: #{tpu_custom_call.1} parent=0
    _
  %s6 = ssub.s32 1, %s4
  %s7 = scalar_select 0, %s6, %s4
  $region1: #{tpu_custom_call.1} parent=0
    #allocation3 [shape = 'u8[24576]{0}', space=vmem, size = 0x6000, scoped, tag = 'output window, operand 0']
    #allocation4 [shape = 's32[2]{0}', space=sflag, size = 0x8, scoped, tag = 'scoped memory for tpu_custom_call.1']
    %8 = vsyncpa [#allocation4], 0
    %s9 = scalar_lea.sflag [#allocation4], 1
    %10 = vsyncpa %s9, 0
    loop: start=0, step=1, limit=4
    $region2: #{tpu_custom_call.1} parent=1 // loop_pre_header
      _
    $region3: #{tpu_custom_call.1} parent=1 // loop_header
      %s12 = sphi 0, %s16
      %p13 = scmp.ge.s32.totalorder %s12, 4
      %s22 = sphi 0, %s24
      %s25 = sphi 0, %s22
      %s26 = sphi 0, %s25
      %s42 = sphi 0, %s26
      %s46 = sphi 0, %s46
      %s48 = sphi 0, %s46
      %s49 = sphi 0, %s48
      %s63 = sphi 0, %s49
      %s67 = sphi 0, %s67
      %s69 = sphi 0, %s67
      %s70 = sphi 0, %s69
      %s84 = sphi 0, %s70
      %s90 = sphi 0, %s92
      %s93 = sphi 0, %s90
      %s94 = sphi 0, %s93
      %s110 = sphi 0, %s94
    $region4: #{tpu_custom_call.1} parent=1 // loop_header_branch
      %15 = sbr.rel (%p13) target = $region8
    $region5: #{tpu_custom_call.1} parent=1 // loop_body
      %s17 = ssub.s32 %s12, 1
      %s18 = ssub.s32 %s12, 2
      %s19 = sadd.s32 %s12, 1
      %s20 = ssub.s32 %s12, %s19
      %p21 = scmp.eq.s32.totalorder %s20, 0
      %s23 = sadd.s32 %s22, 1
      %s24 = scalar_select %p21, %s22, %s23
      %p27 = pneg %p21
      %p28 = scmp.eq.s32.totalorder %s12, 1
      %p29 = por %p27, %p28
      %p30 = scmp.ne.s32.totalorder %s22, %s25
      %p31 = scmp.eq.s32.totalorder %s12, 0
      %p32 = por %p30, %p31
      %p33 = scmp.ne.s32.totalorder %s22, %s25
      %p34 = scmp.eq.s32.totalorder %s17, 1
      %p35 = por %p33, %p34
      %p36 = scmp.ne.s32.totalorder %s25, %s26
      %p37 = scmp.eq.s32.totalorder %s17, 0
      %p38 = por %p36, %p37
      %p39 = scmp.ne.s32.totalorder %s25, %s26
      %p40 = scmp.eq.s32.totalorder %s18, 1
      %p41 = por %p39, %p40
      %p43 = scmp.ne.s32.totalorder %s26, %s42
      %p44 = scmp.eq.s32.totalorder %s18, 0
      %p45 = por %p43, %p44
      %s47 = sadd.s32 %s46, 1
      %p50 = scmp.eq.s32.totalorder %s12, 1
      %p51 = scmp.ne.s32.totalorder %s46, %s48
      %p52 = scmp.eq.s32.totalorder %s12, 0
      %p53 = por %p51, %p52
      %p54 = scmp.ne.s32.totalorder %s46, %s48
      %p55 = scmp.eq.s32.totalorder %s17, 1
      %p56 = por %p54, %p55
      %p57 = scmp.ne.s32.totalorder %s48, %s49
      %p58 = scmp.eq.s32.totalorder %s17, 0
      %p59 = por %p57, %p58
      %p60 = scmp.ne.s32.totalorder %s48, %s49
      %p61 = scmp.eq.s32.totalorder %s18, 1
      %p62 = por %p60, %p61
      %p64 = scmp.ne.s32.totalorder %s49, %s63
      %p65 = scmp.eq.s32.totalorder %s18, 0
      %p66 = por %p64, %p65
      %s68 = sadd.s32 %s67, 1
      %p71 = scmp.eq.s32.totalorder %s12, 1
      %p72 = scmp.ne.s32.totalorder %s67, %s69
      %p73 = scmp.eq.s32.totalorder %s12, 0
      %p74 = por %p72, %p73
      %p75 = scmp.ne.s32.totalorder %s67, %s69
      %p76 = scmp.eq.s32.totalorder %s17, 1
      %p77 = por %p75, %p76
      %p78 = scmp.ne.s32.totalorder %s69, %s70
      %p79 = scmp.eq.s32.totalorder %s17, 0
      %p80 = por %p78, %p79
      %p81 = scmp.ne.s32.totalorder %s69, %s70
      %p82 = scmp.eq.s32.totalorder %s18, 1
      %p83 = por %p81, %p82
      %p85 = scmp.ne.s32.totalorder %s70, %s84
      %p86 = scmp.eq.s32.totalorder %s18, 0
      %p87 = por %p85, %p86
      %s88 = ssub.s32 %s12, %s19
      %p89 = scmp.eq.s32.totalorder %s88, 0
      %s91 = sadd.s32 %s90, 1
      %s92 = scalar_select %p89, %s90, %s91
      %p95 = pneg %p89
      %p96 = scmp.eq.s32.totalorder %s12, 1
      %p97 = por %p95, %p96
      %p98 = scmp.ne.s32.totalorder %s90, %s93
      %p99 = scmp.eq.s32.totalorder %s12, 0
      %p100 = por %p98, %p99
      %p101 = scmp.ne.s32.totalorder %s90, %s93
      %p102 = scmp.eq.s32.totalorder %s17, 1
      %p103 = por %p101, %p102
      %p104 = scmp.ne.s32.totalorder %s93, %s94
      %p105 = scmp.eq.s32.totalorder %s17, 0
      %p106 = por %p104, %p105
      %p107 = scmp.ne.s32.totalorder %s93, %s94
      %p108 = scmp.eq.s32.totalorder %s18, 1
      %p109 = por %p107, %p108
      %p111 = scmp.ne.s32.totalorder %s94, %s110
      %p112 = scmp.eq.s32.totalorder %s18, 0
      %p113 = por %p111, %p112
      %p114 = scmp.le.s32.totalorder 1, %s12
      %p115 = scmp.lt.s32.totalorder %s12, 3
      %p116 = pnand %p114, %p115
      %p117 = pneg %p116
      // Predicated region
      $region9: #{tpu_custom_call.1} parent=5 // pred_check
        _
      $region10: #{tpu_custom_call.1} parent=5 // pred_check_branch
        %119 = sbr.rel (%p116) target = $region12
      $region11: #{tpu_custom_call.1} parent=5 // pred_region
        %s120 = ssub.s32 %s12, 1
        // Predicated region
        $region13: #{tpu_custom_call.1} parent=11 // pred_check
          %p121 = pneg %p59
        $region14: #{tpu_custom_call.1} parent=11 // pred_check_branch
          %123 = sbr.rel (%p121) target = $region16
        $region15: #{tpu_custom_call.1} parent=11 // pred_region
          _
        $region16: #{tpu_custom_call.1} parent=11 // pred_fallthru
          _
        // Predicated region
        $region17: #{tpu_custom_call.1} parent=11 // pred_check
          %p124 = pneg %p80
        $region18: #{tpu_custom_call.1} parent=11 // pred_check_branch
          %126 = sbr.rel (%p124) target = $region20
        $region19: #{tpu_custom_call.1} parent=11 // pred_region
          _
        $region20: #{tpu_custom_call.1} parent=11 // pred_fallthru
          _
      $region12: #{tpu_custom_call.1} parent=5 // pred_fallthru
        _
      %p127 = scmp.lt.s32.totalorder %s12, 2
      // Predicated region
      $region21: #{tpu_custom_call.1} parent=5 // pred_check
        %p128 = pneg %p127
      $region22: #{tpu_custom_call.1} parent=5 // pred_check_branch
        %130 = sbr.rel (%p128) target = $region24
      $region23: #{tpu_custom_call.1} parent=5 // pred_region
        // Predicated region
        $region25: #{tpu_custom_call.1} parent=23 // pred_check
          %p131 = pneg %p32
        $region26: #{tpu_custom_call.1} parent=23 // pred_check_branch
          %133 = sbr.rel (%p131) target = $region28
        $region27: #{tpu_custom_call.1} parent=23 // pred_region
          %p134 = scmp.lt.s32.totalorder %s12, 1
          %s135 = scalar_select %p134, %s12, 1
          %s136 = smul.addr %s135, 32
          %s137 = smul.addr %s136, 8
          %s138 = scalar_lea.vmem %s0, %s137
        $region28: #{tpu_custom_call.1} parent=23 // pred_fallthru
          _
      $region24: #{tpu_custom_call.1} parent=5 // pred_fallthru
        _
      %p139 = scmp.le.s32.totalorder 1, %s12
      %p140 = scmp.lt.s32.totalorder %s12, 3
      %p141 = pnand %p139, %p140
      %p142 = pneg %p141
      // Predicated region
      $region29: #{tpu_custom_call.1} parent=5 // pred_check
        _
      $region30: #{tpu_custom_call.1} parent=5 // pred_check_branch
        %144 = sbr.rel (%p141) target = $region32
      $region31: #{tpu_custom_call.1} parent=5 // pred_region
        %s145 = ssub.s32 %s12, 1
        %p146 = scmp.lt.s32.totalorder %s17, 1
        %s147 = scalar_select %p146, %s17, 1
        %s148 = smul.addr %s147, 32
        %s149 = smul.addr %s148, 8
        %s150 = scalar_lea.vmem %s0, %s149
        %p151 = pneg %p38
        %p152 = pneg %p35
        %p153 = pneg %p59
        %p154 = pneg %p56
        %p155 = pneg %p80
        %p156 = pneg %p77
        %p157 = pneg %p106
        %p158 = pneg %p103
        %s159 = sand.u32 %s93, 1
        %s160 = scalar_lea.sflag [#allocation4], %s159
        %s161 = sand.u32 %s93, 1
        %s162 = smul.addr %s161, 24
        %s163 = scalar_lea.vmem [#allocation3], %s162
        %p164 = scmp.lt.s32.totalorder %s17, 1
        %s165 = scalar_select %p164, %s17, 1
        %s166 = smul.addr %s165, 32
        %s167 = smul.addr %s166, 8
        %s168 = scalar_lea.vmem %s0, %s167
        %vm170 = vcmask 64512
        %171 = vst.msk [vmem:[#allocation2] sm:$0xff] %vm170, 0.0
        %172 = vst.msk [vmem:[#allocation2 + $0x8] sm:$0xff] %vm170, 0.0
        %vm173 = vcmask 58368
        %174 = vst.msk [vmem:[#allocation2 + $0x10] sm:$0x3] %vm173, 0.0
        %175 = vst.msk [vmem:[#allocation2 + $0x18] sm:$0xff] %vm170, 0.0
        %176 = vst.msk [vmem:[#allocation2 + $0x20] sm:$0xff] %vm170, 0.0
        %177 = vst.msk [vmem:[#allocation2 + $0x28] sm:$0x3] %vm173, 0.0
        %178 = vst.msk [vmem:[#allocation2 + $0x30] sm:$0xff] %vm170, 0.0
        %179 = vst.msk [vmem:[#allocation2 + $0x38] sm:$0xff] %vm170, 0.0
        %180 = vst.msk [vmem:[#allocation2 + $0x40] sm:$0x3] %vm173, 0.0
        %181 = vst.msk [vmem:[#allocation2 + $0x48] sm:$0xff] %vm170, 0.0
        %182 = vst.msk [vmem:[#allocation2 + $0x50] sm:$0xff] %vm170, 0.0
        %183 = vst.msk [vmem:[#allocation2 + $0x58] sm:$0x3] %vm173, 0.0
        %184 = vst.msk [vmem:[#allocation2 + $0x60] sm:$0xff] %vm170, 0.0
        %185 = vst.msk [vmem:[#allocation2 + $0x68] sm:$0xff] %vm170, 0.0
        %186 = vst.msk [vmem:[#allocation2 + $0x70] sm:$0x3] %vm173, 0.0
        %187 = vst.msk [vmem:[#allocation2 + $0x78] sm:$0xff] %vm170, 0.0
        %188 = vst.msk [vmem:[#allocation2 + $0x80] sm:$0xff] %vm170, 0.0
        %189 = vst.msk [vmem:[#allocation2 + $0x88] sm:$0x3] %vm173, 0.0
        %190 = vst.msk [vmem:[#allocation2 + $0x90] sm:$0xff] %vm170, 0.0
        %191 = vst.msk [vmem:[#allocation2 + $0x98] sm:$0xff] %vm170, 0.0
        %192 = vst.msk [vmem:[#allocation2 + $0xa0] sm:$0x3] %vm173, 0.0
        %193 = vst.msk [vmem:[#allocation2 + $0xa8] sm:$0xff] %vm170, 0.0
        %194 = vst.msk [vmem:[#allocation2 + $0xb0] sm:$0xff] %vm170, 0.0
        %195 = vst.msk [vmem:[#allocation2 + $0xb8] sm:$0x3] %vm173, 0.0
        %196 = vst.msk [vmem:[#allocation2 + $0xc0] sm:$0xff] %vm170, 0.0
        %197 = vst.msk [vmem:[#allocation2 + $0xc8] sm:$0xff] %vm170, 0.0
        %198 = vst.msk [vmem:[#allocation2 + $0xd0] sm:$0x3] %vm173, 0.0
        %199 = vst.msk [vmem:[#allocation2 + $0xd8] sm:$0xff] %vm170, 0.0
        %200 = vst.msk [vmem:[#allocation2 + $0xe0] sm:$0xff] %vm170, 0.0
        %201 = vst.msk [vmem:[#allocation2 + $0xe8] sm:$0x3] %vm173, 0.0
        %202 = vst.msk [vmem:[#allocation2 + $0xf0] sm:$0xff] %vm170, 0.0
        %203 = vst.msk [vmem:[#allocation2 + $0xf8] sm:$0xff] %vm170, 0.0
        %204 = vst.msk [vmem:[#allocation2 + $0x100] sm:$0x3] %vm173, 0.0
        %205 = vst.msk [vmem:[#allocation2 + $0x108] sm:$0xff] %vm170, 0.0
        %206 = vst.msk [vmem:[#allocation2 + $0x110] sm:$0xff] %vm170, 0.0
        %207 = vst.msk [vmem:[#allocation2 + $0x118] sm:$0x3] %vm173, 0.0
        %208 = vst.msk [vmem:[#allocation2 + $0x120] sm:$0xff] %vm170, 0.0
        %209 = vst.msk [vmem:[#allocation2 + $0x128] sm:$0xff] %vm170, 0.0
        %210 = vst.msk [vmem:[#allocation2 + $0x130] sm:$0x3] %vm173, 0.0
        %211 = vst.msk [vmem:[#allocation2 + $0x138] sm:$0xff] %vm170, 0.0
        %212 = vst.msk [vmem:[#allocation2 + $0x140] sm:$0xff] %vm170, 0.0
        %213 = vst.msk [vmem:[#allocation2 + $0x148] sm:$0x3] %vm173, 0.0
        %214 = vst.msk [vmem:[#allocation2 + $0x150] sm:$0xff] %vm170, 0.0
        %215 = vst.msk [vmem:[#allocation2 + $0x158] sm:$0xff] %vm170, 0.0
        %216 = vst.msk [vmem:[#allocation2 + $0x160] sm:$0x3] %vm173, 0.0
        %217 = vst.msk [vmem:[#allocation2 + $0x168] sm:$0xff] %vm170, 0.0
        %218 = vst.msk [vmem:[#allocation2 + $0x170] sm:$0xff] %vm170, 0.0
        %219 = vst.msk [vmem:[#allocation2 + $0x178] sm:$0x3] %vm173, 0.0
        %220 = vst.msk [vmem:[#allocation2 + $0x180] sm:$0xff] %vm170, 0.0
        %221 = vst.msk [vmem:[#allocation2 + $0x188] sm:$0xff] %vm170, 0.0
        %222 = vst.msk [vmem:[#allocation2 + $0x190] sm:$0x3] %vm173, 0.0
        %223 = vst.msk [vmem:[#allocation2 + $0x198] sm:$0xff] %vm170, 0.0
        %224 = vst.msk [vmem:[#allocation2 + $0x1a0] sm:$0xff] %vm170, 0.0
        %225 = vst.msk [vmem:[#allocation2 + $0x1a8] sm:$0x3] %vm173, 0.0
        %v226 = vld [vmem:[%s168] sm:$0xff]
        %v227 = vld [vmem:[%s168 + $0x8] sm:$0xff]
        %v228 = vld [vmem:[%s168 + $0x10] sm:$0xff]
        %v229 = vld [vmem:[%s168 + $0x18] sm:$0xff]
        %v230 = vld [vmem:[%s168 + $0x20] sm:$0xff]
        %v231 = vld [vmem:[%s168 + $0x28] sm:$0xff]
        %v232 = vld [vmem:[%s168 + $0x30] sm:$0xff]
        %v233 = vld [vmem:[%s168 + $0x38] sm:$0xff]
        %v234 = vld [vmem:[%s168 + $0x40] sm:$0xff]
        %v235 = vld [vmem:[%s168 + $0x48] sm:$0xff]
        %v236 = vld [vmem:[%s168 + $0x50] sm:$0xff]
        %v237 = vld [vmem:[%s168 + $0x58] sm:$0xff]
        %v238 = vld [vmem:[%s168 + $0x60] sm:$0xff]
        %v239 = vld [vmem:[%s168 + $0x68] sm:$0xff]
        %v240 = vld [vmem:[%s168 + $0x70] sm:$0xff]
        %v241 = vld [vmem:[%s168 + $0x78] sm:$0xff]
        %v242 = vld [vmem:[%s168 + $0x80] sm:$0xff]
        %v243 = vld [vmem:[%s168 + $0x88] sm:$0xff]
        %v244 = vld [vmem:[%s168 + $0x90] sm:$0xff]
        %v245 = vld [vmem:[%s168 + $0x98] sm:$0xff]
        %v246 = vld [vmem:[%s168 + $0xa0] sm:$0xff]
        %v247 = vld [vmem:[%s168 + $0xa8] sm:$0xff]
        %v248 = vld [vmem:[%s168 + $0xb0] sm:$0xff]
        %v249 = vld [vmem:[%s168 + $0xb8] sm:$0xff]
        %v250 = vld [vmem:[%s168 + $0xc0] sm:$0xff]
        %v251 = vld [vmem:[%s168 + $0xc8] sm:$0xff]
        %v252 = vld [vmem:[%s168 + $0xd0] sm:$0xff]
        %v253 = vld [vmem:[%s168 + $0xd8] sm:$0xff]
        %v254 = vld [vmem:[%s168 + $0xe0] sm:$0xff]
        %v255 = vld [vmem:[%s168 + $0xe8] sm:$0xff]
        %v256 = vld [vmem:[%s168 + $0xf0] sm:$0xff]
        %v257 = vld [vmem:[%s168 + $0xf8] sm:$0xff]
        %s258 = scalar_lea.vmem [#allocation2], 24
        %259 = vst.msk [vmem:[%s258 + $0x1] sm:$0xff] %vm170, %v226
        %260 = vst.msk [vmem:[%s258 + $0x9] sm:$0xff] %vm170, %v227
        %261 = vst.msk [vmem:[%s258 + $0x19] sm:$0xff] %vm170, %v228
        %262 = vst.msk [vmem:[%s258 + $0x21] sm:$0xff] %vm170, %v229
        %263 = vst.msk [vmem:[%s258 + $0x31] sm:$0xff] %vm170, %v230
        %264 = vst.msk [vmem:[%s258 + $0x39] sm:$0xff] %vm170, %v231
        %265 = vst.msk [vmem:[%s258 + $0x49] sm:$0xff] %vm170, %v232
        %266 = vst.msk [vmem:[%s258 + $0x51] sm:$0xff] %vm170, %v233
        %267 = vst.msk [vmem:[%s258 + $0x61] sm:$0xff] %vm170, %v234
        %268 = vst.msk [vmem:[%s258 + $0x69] sm:$0xff] %vm170, %v235
        %269 = vst.msk [vmem:[%s258 + $0x79] sm:$0xff] %vm170, %v236
        %270 = vst.msk [vmem:[%s258 + $0x81] sm:$0xff] %vm170, %v237
        %271 = vst.msk [vmem:[%s258 + $0x91] sm:$0xff] %vm170, %v238
        %272 = vst.msk [vmem:[%s258 + $0x99] sm:$0xff] %vm170, %v239
        %273 = vst.msk [vmem:[%s258 + $0xa9] sm:$0xff] %vm170, %v240
        %274 = vst.msk [vmem:[%s258 + $0xb1] sm:$0xff] %vm170, %v241
        %275 = vst.msk [vmem:[%s258 + $0xc1] sm:$0xff] %vm170, %v242
        %276 = vst.msk [vmem:[%s258 + $0xc9] sm:$0xff] %vm170, %v243
        %277 = vst.msk [vmem:[%s258 + $0xd9] sm:$0xff] %vm170, %v244
        %278 = vst.msk [vmem:[%s258 + $0xe1] sm:$0xff] %vm170, %v245
        %279 = vst.msk [vmem:[%s258 + $0xf1] sm:$0xff] %vm170, %v246
        %280 = vst.msk [vmem:[%s258 + $0xf9] sm:$0xff] %vm170, %v247
        %281 = vst.msk [vmem:[%s258 + $0x109] sm:$0xff] %vm170, %v248
        %282 = vst.msk [vmem:[%s258 + $0x111] sm:$0xff] %vm170, %v249
        %283 = vst.msk [vmem:[%s258 + $0x121] sm:$0xff] %vm170, %v250
        %284 = vst.msk [vmem:[%s258 + $0x129] sm:$0xff] %vm170, %v251
        %285 = vst.msk [vmem:[%s258 + $0x139] sm:$0xff] %vm170, %v252
        %286 = vst.msk [vmem:[%s258 + $0x141] sm:$0xff] %vm170, %v253
        %287 = vst.msk [vmem:[%s258 + $0x151] sm:$0xff] %vm170, %v254
        %288 = vst.msk [vmem:[%s258 + $0x159] sm:$0xff] %vm170, %v255
        %289 = vst.msk [vmem:[%s258 + $0x169] sm:$0xff] %vm170, %v256
        %290 = vst.msk [vmem:[%s258 + $0x171] sm:$0xff] %vm170, %v257
        %v291 = vld [vmem:[#allocation2] sm:$0xff]
        %v292 = vld [vmem:[#allocation2 + $0x8] sm:$0xff]
        %v293 = vld [vmem:[#allocation2 + $0x10] sm:$0x3]
        %v294 = vld [vmem:[#allocation2 + $0x18] sm:$0xff]
        %v295 = vld [vmem:[#allocation2 + $0x20] sm:$0xff]
        %v296 = vld [vmem:[#allocation2 + $0x28] sm:$0x3]
        %v297 = vld [vmem:[#allocation2 + $0x30] sm:$0xff]
        %v298 = vld [vmem:[#allocation2 + $0x38] sm:$0xff]
        %v299 = vld [vmem:[#allocation2 + $0x40] sm:$0x3]
        %v300 = vld [vmem:[#allocation2 + $0x48] sm:$0xff]
        %v301 = vld [vmem:[#allocation2 + $0x50] sm:$0xff]
        %v302 = vld [vmem:[#allocation2 + $0x58] sm:$0x3]
        %v303 = vld [vmem:[#allocation2 + $0x60] sm:$0xff]
        %v304 = vld [vmem:[#allocation2 + $0x68] sm:$0xff]
        %v305 = vld [vmem:[#allocation2 + $0x70] sm:$0x3]
        %v306 = vld [vmem:[#allocation2 + $0x78] sm:$0xff]
        %v307 = vld [vmem:[#allocation2 + $0x80] sm:$0xff]
        %v308 = vld [vmem:[#allocation2 + $0x88] sm:$0x3]
        %v309 = vld [vmem:[#allocation2 + $0x90] sm:$0xff]
        %v310 = vld [vmem:[#allocation2 + $0x98] sm:$0xff]
        %v311 = vld [vmem:[#allocation2 + $0xa0] sm:$0x3]
        %v312 = vld [vmem:[#allocation2 + $0xa8] sm:$0xff]
        %v313 = vld [vmem:[#allocation2 + $0xb0] sm:$0xff]
        %v314 = vld [vmem:[#allocation2 + $0xb8] sm:$0x3]
        %v315 = vld [vmem:[#allocation2 + $0xc0] sm:$0xff]
        %v316 = vld [vmem:[#allocation2 + $0xc8] sm:$0xff]
        %v317 = vld [vmem:[#allocation2 + $0xd0] sm:$0x3]
        %v318 = vld [vmem:[#allocation2 + $0xd8] sm:$0xff]
        %v319 = vld [vmem:[#allocation2 + $0xe0] sm:$0xff]
        %v320 = vld [vmem:[#allocation2 + $0xe8] sm:$0x3]
        %v321 = vld [vmem:[#allocation2 + $0xf0] sm:$0xff]
        %v322 = vld [vmem:[#allocation2 + $0xf8] sm:$0xff]
        %v323 = vld [vmem:[#allocation2 + $0x100] sm:$0x3]
        %v324 = vld [vmem:[#allocation2 + $0x108] sm:$0xff]
        %v325 = vld [vmem:[#allocation2 + $0x110] sm:$0xff]
        %v326 = vld [vmem:[#allocation2 + $0x118] sm:$0x3]
        %v327 = vld [vmem:[#allocation2 + $0x120] sm:$0xff]
        %v328 = vld [vmem:[#allocation2 + $0x128] sm:$0xff]
        %v329 = vld [vmem:[#allocation2 + $0x130] sm:$0x3]
        %v330 = vld [vmem:[#allocation2 + $0x138] sm:$0xff]
        %v331 = vld [vmem:[#allocation2 + $0x140] sm:$0xff]
        %v332 = vld [vmem:[#allocation2 + $0x148] sm:$0x3]
        %v333 = vld [vmem:[#allocation2 + $0x150] sm:$0xff]
        %v334 = vld [vmem:[#allocation2 + $0x158] sm:$0xff]
        %v335 = vld [vmem:[#allocation2 + $0x160] sm:$0x3]
        %v336 = vld [vmem:[#allocation2 + $0x168] sm:$0xff]
        %v337 = vld [vmem:[#allocation2 + $0x170] sm:$0xff]
        %v338 = vld [vmem:[#allocation2 + $0x178] sm:$0x3]
        %v339 = vld [vmem:[#allocation2 + $0x180] sm:$0xff]
        %v340 = vld [vmem:[#allocation2 + $0x188] sm:$0xff]
        %v341 = vld [vmem:[#allocation2 + $0x190] sm:$0x3]
        %v342 = vld [vmem:[#allocation2 + $0x198] sm:$0xff]
        %v343 = vld [vmem:[#allocation2 + $0x1a0] sm:$0xff]
        %v344 = vld [vmem:[#allocation2 + $0x1a8] sm:$0x3]
        %v399 = vcombine.high %v291, %v291
        %v401 = vunpack.c.l.s4 1983009808
        %v402 = vunpack.c.0.s8 %v401
        %v403 = vlaneseq
        %v404 = vshrl.u32 %v403, 7
        %v405 = vsub.s32 %v402, %v404
        %v406 = vrot.slane %v291, %v405
        %v408 = vunpack.c.l.s4 1983009808
        %v409 = vunpack.c.0.s8 %v408
        %v410 = vlaneseq
        %v411 = vshrl.u32 %v410, 7
        %v412 = vsub.s32 %v409, %v411
        %v413 = vrot.slane %v399, %v412
        %v414 = vcombine.high %v406, %v406
        %v415 = vcombine.high %v413, %v413
        %v416 = vcombine.high %v292, %v292
        %v418 = vunpack.c.l.s4 1983009808
        %v419 = vunpack.c.0.s8 %v418
        %v420 = vlaneseq
        %v421 = vshrl.u32 %v420, 7
        %v422 = vsub.s32 %v419, %v421
        %v423 = vrot.slane %v292, %v422
        %v425 = vunpack.c.l.s4 1983009808
        %v426 = vunpack.c.0.s8 %v425
        %v427 = vlaneseq
        %v428 = vshrl.u32 %v427, 7
        %v429 = vsub.s32 %v426, %v428
        %v430 = vrot.slane %v416, %v429
        %v431 = vcombine.high %v423, %v423
        %v432 = vcombine.high %v430, %v430
        %v434 = vunpack.c.l.s4 1983009808
        %v435 = vunpack.c.0.s8 %v434
        %v436 = vlaneseq
        %v437 = vshrl.u32 %v436, 7
        %v438 = vsub.s32 %v435, %v437
        %v439 = vrot.slane %v293, %v438
        %v440 = vcombine.high %v294, %v294
        %v442 = vunpack.c.l.s4 1983009808
        %v443 = vunpack.c.0.s8 %v442
        %v444 = vlaneseq
        %v445 = vshrl.u32 %v444, 7
        %v446 = vsub.s32 %v443, %v445
        %v447 = vrot.slane %v294, %v446
        %v449 = vunpack.c.l.s4 1983009808
        %v450 = vunpack.c.0.s8 %v449
        %v451 = vlaneseq
        %v452 = vshrl.u32 %v451, 7
        %v453 = vsub.s32 %v450, %v452
        %v454 = vrot.slane %v440, %v453
        %v455 = vcombine.high %v447, %v447
        %v456 = vcombine.high %v454, %v454
        %v457 = vcombine.high %v295, %v295
        %v459 = vunpack.c.l.s4 1983009808
        %v460 = vunpack.c.0.s8 %v459
        %v461 = vlaneseq
        %v462 = vshrl.u32 %v461, 7
        %v463 = vsub.s32 %v460, %v462
        %v464 = vrot.slane %v295, %v463
        %v466 = vunpack.c.l.s4 1983009808
        %v467 = vunpack.c.0.s8 %v466
        %v468 = vlaneseq
        %v469 = vshrl.u32 %v468, 7
        %v470 = vsub.s32 %v467, %v469
        %v471 = vrot.slane %v457, %v470
        %v472 = vcombine.high %v464, %v464
        %v473 = vcombine.high %v471, %v471
        %v475 = vunpack.c.l.s4 1983009808
        %v476 = vunpack.c.0.s8 %v475
        %v477 = vlaneseq
        %v478 = vshrl.u32 %v477, 7
        %v479 = vsub.s32 %v476, %v478
        %v480 = vrot.slane %v296, %v479
        %v481 = vcombine.high %v297, %v297
        %v483 = vunpack.c.l.s4 1983009808
        %v484 = vunpack.c.0.s8 %v483
        %v485 = vlaneseq
        %v486 = vshrl.u32 %v485, 7
        %v487 = vsub.s32 %v484, %v486
        %v488 = vrot.slane %v297, %v487
        %v490 = vunpack.c.l.s4 1983009808
        %v491 = vunpack.c.0.s8 %v490
        %v492 = vlaneseq
        %v493 = vshrl.u32 %v492, 7
        %v494 = vsub.s32 %v491, %v493
        %v495 = vrot.slane %v481, %v494
        %v496 = vcombine.high %v488, %v488
        %v497 = vcombine.high %v495, %v495
        %v498 = vcombine.high %v298, %v298
        %v500 = vunpack.c.l.s4 1983009808
        %v501 = vunpack.c.0.s8 %v500
        %v502 = vlaneseq
        %v503 = vshrl.u32 %v502, 7
        %v504 = vsub.s32 %v501, %v503
        %v505 = vrot.slane %v298, %v504
        %v507 = vunpack.c.l.s4 1983009808
        %v508 = vunpack.c.0.s8 %v507
        %v509 = vlaneseq
        %v510 = vshrl.u32 %v509, 7
        %v511 = vsub.s32 %v508, %v510
        %v512 = vrot.slane %v498, %v511
        %v513 = vcombine.high %v505, %v505
        %v514 = vcombine.high %v512, %v512
        %v516 = vunpack.c.l.s4 1983009808
        %v517 = vunpack.c.0.s8 %v516
        %v518 = vlaneseq
        %v519 = vshrl.u32 %v518, 7
        %v520 = vsub.s32 %v517, %v519
        %v521 = vrot.slane %v299, %v520
        %v522 = vcombine.high %v300, %v300
        %v524 = vunpack.c.l.s4 1983009808
        %v525 = vunpack.c.0.s8 %v524
        %v526 = vlaneseq
        %v527 = vshrl.u32 %v526, 7
        %v528 = vsub.s32 %v525, %v527
        %v529 = vrot.slane %v300, %v528
        %v531 = vunpack.c.l.s4 1983009808
        %v532 = vunpack.c.0.s8 %v531
        %v533 = vlaneseq
        %v534 = vshrl.u32 %v533, 7
        %v535 = vsub.s32 %v532, %v534
        %v536 = vrot.slane %v522, %v535
        %v537 = vcombine.high %v529, %v529
        %v538 = vcombine.high %v536, %v536
        %v539 = vcombine.high %v301, %v301
        %v541 = vunpack.c.l.s4 1983009808
        %v542 = vunpack.c.0.s8 %v541
        %v543 = vlaneseq
        %v544 = vshrl.u32 %v543, 7
        %v545 = vsub.s32 %v542, %v544
        %v546 = vrot.slane %v301, %v545
        %v548 = vunpack.c.l.s4 1983009808
        %v549 = vunpack.c.0.s8 %v548
        %v550 = vlaneseq
        %v551 = vshrl.u32 %v550, 7
        %v552 = vsub.s32 %v549, %v551
        %v553 = vrot.slane %v539, %v552
        %v554 = vcombine.high %v546, %v546
        %v555 = vcombine.high %v553, %v553
        %v557 = vunpack.c.l.s4 1983009808
        %v558 = vunpack.c.0.s8 %v557
        %v559 = vlaneseq
        %v560 = vshrl.u32 %v559, 7
        %v561 = vsub.s32 %v558, %v560
        %v562 = vrot.slane %v302, %v561
        %v563 = vcombine.high %v303, %v303
        %v565 = vunpack.c.l.s4 1983009808
        %v566 = vunpack.c.0.s8 %v565
        %v567 = vlaneseq
        %v568 = vshrl.u32 %v567, 7
        %v569 = vsub.s32 %v566, %v568
        %v570 = vrot.slane %v303, %v569
        %v572 = vunpack.c.l.s4 1983009808
        %v573 = vunpack.c.0.s8 %v572
        %v574 = vlaneseq
        %v575 = vshrl.u32 %v574, 7
        %v576 = vsub.s32 %v573, %v575
        %v577 = vrot.slane %v563, %v576
        %v578 = vcombine.high %v570, %v570
        %v579 = vcombine.high %v577, %v577
        %v580 = vcombine.high %v304, %v304
        %v582 = vunpack.c.l.s4 1983009808
        %v583 = vunpack.c.0.s8 %v582
        %v584 = vlaneseq
        %v585 = vshrl.u32 %v584, 7
        %v586 = vsub.s32 %v583, %v585
        %v587 = vrot.slane %v304, %v586
        %v589 = vunpack.c.l.s4 1983009808
        %v590 = vunpack.c.0.s8 %v589
        %v591 = vlaneseq
        %v592 = vshrl.u32 %v591, 7
        %v593 = vsub.s32 %v590, %v592
        %v594 = vrot.slane %v580, %v593
        %v595 = vcombine.high %v587, %v587
        %v596 = vcombine.high %v594, %v594
        %v598 = vunpack.c.l.s4 1983009808
        %v599 = vunpack.c.0.s8 %v598
        %v600 = vlaneseq
        %v601 = vshrl.u32 %v600, 7
        %v602 = vsub.s32 %v599, %v601
        %v603 = vrot.slane %v305, %v602
        %v604 = vcombine.high %v306, %v306
        %v606 = vunpack.c.l.s4 1983009808
        %v607 = vunpack.c.0.s8 %v606
        %v608 = vlaneseq
        %v609 = vshrl.u32 %v608, 7
        %v610 = vsub.s32 %v607, %v609
        %v611 = vrot.slane %v306, %v610
        %v613 = vunpack.c.l.s4 1983009808
        %v614 = vunpack.c.0.s8 %v613
        %v615 = vlaneseq
        %v616 = vshrl.u32 %v615, 7
        %v617 = vsub.s32 %v614, %v616
        %v618 = vrot.slane %v604, %v617
        %v619 = vcombine.high %v611, %v611
        %v620 = vcombine.high %v618, %v618
        %v621 = vcombine.high %v307, %v307
        %v623 = vunpack.c.l.s4 1983009808
        %v624 = vunpack.c.0.s8 %v623
        %v625 = vlaneseq
        %v626 = vshrl.u32 %v625, 7
        %v627 = vsub.s32 %v624, %v626
        %v628 = vrot.slane %v307, %v627
        %v630 = vunpack.c.l.s4 1983009808
        %v631 = vunpack.c.0.s8 %v630
        %v632 = vlaneseq
        %v633 = vshrl.u32 %v632, 7
        %v634 = vsub.s32 %v631, %v633
        %v635 = vrot.slane %v621, %v634
        %v636 = vcombine.high %v628, %v628
        %v637 = vcombine.high %v635, %v635
        %v639 = vunpack.c.l.s4 1983009808
        %v640 = vunpack.c.0.s8 %v639
        %v641 = vlaneseq
        %v642 = vshrl.u32 %v641, 7
        %v643 = vsub.s32 %v640, %v642
        %v644 = vrot.slane %v308, %v643
        %v645 = vcombine.high %v309, %v309
        %v647 = vunpack.c.l.s4 1983009808
        %v648 = vunpack.c.0.s8 %v647
        %v649 = vlaneseq
        %v650 = vshrl.u32 %v649, 7
        %v651 = vsub.s32 %v648, %v650
        %v652 = vrot.slane %v309, %v651
        %v654 = vunpack.c.l.s4 1983009808
        %v655 = vunpack.c.0.s8 %v654
        %v656 = vlaneseq
        %v657 = vshrl.u32 %v656, 7
        %v658 = vsub.s32 %v655, %v657
        %v659 = vrot.slane %v645, %v658
        %v660 = vcombine.high %v652, %v652
        %v661 = vcombine.high %v659, %v659
        %v662 = vcombine.high %v310, %v310
        %v664 = vunpack.c.l.s4 1983009808
        %v665 = vunpack.c.0.s8 %v664
        %v666 = vlaneseq
        %v667 = vshrl.u32 %v666, 7
        %v668 = vsub.s32 %v665, %v667
        %v669 = vrot.slane %v310, %v668
        %v671 = vunpack.c.l.s4 1983009808
        %v672 = vunpack.c.0.s8 %v671
        %v673 = vlaneseq
        %v674 = vshrl.u32 %v673, 7
        %v675 = vsub.s32 %v672, %v674
        %v676 = vrot.slane %v662, %v675
        %v677 = vcombine.high %v669, %v669
        %v678 = vcombine.high %v676, %v676
        %v680 = vunpack.c.l.s4 1983009808
        %v681 = vunpack.c.0.s8 %v680
        %v682 = vlaneseq
        %v683 = vshrl.u32 %v682, 7
        %v684 = vsub.s32 %v681, %v683
        %v685 = vrot.slane %v311, %v684
        %v686 = vcombine.high %v312, %v312
        %v688 = vunpack.c.l.s4 1983009808
        %v689 = vunpack.c.0.s8 %v688
        %v690 = vlaneseq
        %v691 = vshrl.u32 %v690, 7
        %v692 = vsub.s32 %v689, %v691
        %v693 = vrot.slane %v312, %v692
        %v695 = vunpack.c.l.s4 1983009808
        %v696 = vunpack.c.0.s8 %v695
        %v697 = vlaneseq
        %v698 = vshrl.u32 %v697, 7
        %v699 = vsub.s32 %v696, %v698
        %v700 = vrot.slane %v686, %v699
        %v701 = vcombine.high %v693, %v693
        %v702 = vcombine.high %v700, %v700
        %v703 = vcombine.high %v313, %v313
        %v705 = vunpack.c.l.s4 1983009808
        %v706 = vunpack.c.0.s8 %v705
        %v707 = vlaneseq
        %v708 = vshrl.u32 %v707, 7
        %v709 = vsub.s32 %v706, %v708
        %v710 = vrot.slane %v313, %v709
        %v712 = vunpack.c.l.s4 1983009808
        %v713 = vunpack.c.0.s8 %v712
        %v714 = vlaneseq
        %v715 = vshrl.u32 %v714, 7
        %v716 = vsub.s32 %v713, %v715
        %v717 = vrot.slane %v703, %v716
        %v718 = vcombine.high %v710, %v710
        %v719 = vcombine.high %v717, %v717
        %v721 = vunpack.c.l.s4 1983009808
        %v722 = vunpack.c.0.s8 %v721
        %v723 = vlaneseq
        %v724 = vshrl.u32 %v723, 7
        %v725 = vsub.s32 %v722, %v724
        %v726 = vrot.slane %v314, %v725
        %v727 = vcombine.high %v315, %v315
        %v729 = vunpack.c.l.s4 1983009808
        %v730 = vunpack.c.0.s8 %v729
        %v731 = vlaneseq
        %v732 = vshrl.u32 %v731, 7
        %v733 = vsub.s32 %v730, %v732
        %v734 = vrot.slane %v315, %v733
        %v736 = vunpack.c.l.s4 1983009808
        %v737 = vunpack.c.0.s8 %v736
        %v738 = vlaneseq
        %v739 = vshrl.u32 %v738, 7
        %v740 = vsub.s32 %v737, %v739
        %v741 = vrot.slane %v727, %v740
        %v742 = vcombine.high %v734, %v734
        %v743 = vcombine.high %v741, %v741
        %v744 = vcombine.high %v316, %v316
        %v746 = vunpack.c.l.s4 1983009808
        %v747 = vunpack.c.0.s8 %v746
        %v748 = vlaneseq
        %v749 = vshrl.u32 %v748, 7
        %v750 = vsub.s32 %v747, %v749
        %v751 = vrot.slane %v316, %v750
        %v753 = vunpack.c.l.s4 1983009808
        %v754 = vunpack.c.0.s8 %v753
        %v755 = vlaneseq
        %v756 = vshrl.u32 %v755, 7
        %v757 = vsub.s32 %v754, %v756
        %v758 = vrot.slane %v744, %v757
        %v759 = vcombine.high %v751, %v751
        %v760 = vcombine.high %v758, %v758
        %v762 = vunpack.c.l.s4 1983009808
        %v763 = vunpack.c.0.s8 %v762
        %v764 = vlaneseq
        %v765 = vshrl.u32 %v764, 7
        %v766 = vsub.s32 %v763, %v765
        %v767 = vrot.slane %v317, %v766
        %v768 = vcombine.high %v318, %v318
        %v770 = vunpack.c.l.s4 1983009808
        %v771 = vunpack.c.0.s8 %v770
        %v772 = vlaneseq
        %v773 = vshrl.u32 %v772, 7
        %v774 = vsub.s32 %v771, %v773
        %v775 = vrot.slane %v318, %v774
        %v777 = vunpack.c.l.s4 1983009808
        %v778 = vunpack.c.0.s8 %v777
        %v779 = vlaneseq
        %v780 = vshrl.u32 %v779, 7
        %v781 = vsub.s32 %v778, %v780
        %v782 = vrot.slane %v768, %v781
        %v783 = vcombine.high %v775, %v775
        %v784 = vcombine.high %v782, %v782
        %v785 = vcombine.high %v319, %v319
        %v787 = vunpack.c.l.s4 1983009808
        %v788 = vunpack.c.0.s8 %v787
        %v789 = vlaneseq
        %v790 = vshrl.u32 %v789, 7
        %v791 = vsub.s32 %v788, %v790
        %v792 = vrot.slane %v319, %v791
        %v794 = vunpack.c.l.s4 1983009808
        %v795 = vunpack.c.0.s8 %v794
        %v796 = vlaneseq
        %v797 = vshrl.u32 %v796, 7
        %v798 = vsub.s32 %v795, %v797
        %v799 = vrot.slane %v785, %v798
        %v800 = vcombine.high %v792, %v792
        %v801 = vcombine.high %v799, %v799
        %v803 = vunpack.c.l.s4 1983009808
        %v804 = vunpack.c.0.s8 %v803
        %v805 = vlaneseq
        %v806 = vshrl.u32 %v805, 7
        %v807 = vsub.s32 %v804, %v806
        %v808 = vrot.slane %v320, %v807
        %v809 = vcombine.high %v321, %v321
        %v811 = vunpack.c.l.s4 1983009808
        %v812 = vunpack.c.0.s8 %v811
        %v813 = vlaneseq
        %v814 = vshrl.u32 %v813, 7
        %v815 = vsub.s32 %v812, %v814
        %v816 = vrot.slane %v321, %v815
        %v818 = vunpack.c.l.s4 1983009808
        %v819 = vunpack.c.0.s8 %v818
        %v820 = vlaneseq
        %v821 = vshrl.u32 %v820, 7
        %v822 = vsub.s32 %v819, %v821
        %v823 = vrot.slane %v809, %v822
        %v824 = vcombine.high %v816, %v816
        %v825 = vcombine.high %v823, %v823
        %v826 = vcombine.high %v322, %v322
        %v828 = vunpack.c.l.s4 1983009808
        %v829 = vunpack.c.0.s8 %v828
        %v830 = vlaneseq
        %v831 = vshrl.u32 %v830, 7
        %v832 = vsub.s32 %v829, %v831
        %v833 = vrot.slane %v322, %v832
        %v835 = vunpack.c.l.s4 1983009808
        %v836 = vunpack.c.0.s8 %v835
        %v837 = vlaneseq
        %v838 = vshrl.u32 %v837, 7
        %v839 = vsub.s32 %v836, %v838
        %v840 = vrot.slane %v826, %v839
        %v841 = vcombine.high %v833, %v833
        %v842 = vcombine.high %v840, %v840
        %v844 = vunpack.c.l.s4 1983009808
        %v845 = vunpack.c.0.s8 %v844
        %v846 = vlaneseq
        %v847 = vshrl.u32 %v846, 7
        %v848 = vsub.s32 %v845, %v847
        %v849 = vrot.slane %v323, %v848
        %v850 = vcombine.high %v324, %v324
        %v852 = vunpack.c.l.s4 1983009808
        %v853 = vunpack.c.0.s8 %v852
        %v854 = vlaneseq
        %v855 = vshrl.u32 %v854, 7
        %v856 = vsub.s32 %v853, %v855
        %v857 = vrot.slane %v324, %v856
        %v859 = vunpack.c.l.s4 1983009808
        %v860 = vunpack.c.0.s8 %v859
        %v861 = vlaneseq
        %v862 = vshrl.u32 %v861, 7
        %v863 = vsub.s32 %v860, %v862
        %v864 = vrot.slane %v850, %v863
        %v865 = vcombine.high %v857, %v857
        %v866 = vcombine.high %v864, %v864
        %v867 = vcombine.high %v325, %v325
        %v869 = vunpack.c.l.s4 1983009808
        %v870 = vunpack.c.0.s8 %v869
        %v871 = vlaneseq
        %v872 = vshrl.u32 %v871, 7
        %v873 = vsub.s32 %v870, %v872
        %v874 = vrot.slane %v325, %v873
        %v876 = vunpack.c.l.s4 1983009808
        %v877 = vunpack.c.0.s8 %v876
        %v878 = vlaneseq
        %v879 = vshrl.u32 %v878, 7
        %v880 = vsub.s32 %v877, %v879
        %v881 = vrot.slane %v867, %v880
        %v882 = vcombine.high %v874, %v874
        %v883 = vcombine.high %v881, %v881
        %v885 = vunpack.c.l.s4 1983009808
        %v886 = vunpack.c.0.s8 %v885
        %v887 = vlaneseq
        %v888 = vshrl.u32 %v887, 7
        %v889 = vsub.s32 %v886, %v888
        %v890 = vrot.slane %v326, %v889
        %v891 = vcombine.high %v327, %v327
        %v893 = vunpack.c.l.s4 1983009808
        %v894 = vunpack.c.0.s8 %v893
        %v895 = vlaneseq
        %v896 = vshrl.u32 %v895, 7
        %v897 = vsub.s32 %v894, %v896
        %v898 = vrot.slane %v327, %v897
        %v900 = vunpack.c.l.s4 1983009808
        %v901 = vunpack.c.0.s8 %v900
        %v902 = vlaneseq
        %v903 = vshrl.u32 %v902, 7
        %v904 = vsub.s32 %v901, %v903
        %v905 = vrot.slane %v891, %v904
        %v906 = vcombine.high %v898, %v898
        %v907 = vcombine.high %v905, %v905
        %v908 = vcombine.high %v328, %v328
        %v910 = vunpack.c.l.s4 1983009808
        %v911 = vunpack.c.0.s8 %v910
        %v912 = vlaneseq
        %v913 = vshrl.u32 %v912, 7
        %v914 = vsub.s32 %v911, %v913
        %v915 = vrot.slane %v328, %v914
        %v917 = vunpack.c.l.s4 1983009808
        %v918 = vunpack.c.0.s8 %v917
        %v919 = vlaneseq
        %v920 = vshrl.u32 %v919, 7
        %v921 = vsub.s32 %v918, %v920
        %v922 = vrot.slane %v908, %v921
        %v923 = vcombine.high %v915, %v915
        %v924 = vcombine.high %v922, %v922
        %v926 = vunpack.c.l.s4 1983009808
        %v927 = vunpack.c.0.s8 %v926
        %v928 = vlaneseq
        %v929 = vshrl.u32 %v928, 7
        %v930 = vsub.s32 %v927, %v929
        %v931 = vrot.slane %v329, %v930
        %v932 = vcombine.high %v330, %v330
        %v934 = vunpack.c.l.s4 1983009808
        %v935 = vunpack.c.0.s8 %v934
        %v936 = vlaneseq
        %v937 = vshrl.u32 %v936, 7
        %v938 = vsub.s32 %v935, %v937
        %v939 = vrot.slane %v330, %v938
        %v941 = vunpack.c.l.s4 1983009808
        %v942 = vunpack.c.0.s8 %v941
        %v943 = vlaneseq
        %v944 = vshrl.u32 %v943, 7
        %v945 = vsub.s32 %v942, %v944
        %v946 = vrot.slane %v932, %v945
        %v947 = vcombine.high %v939, %v939
        %v948 = vcombine.high %v946, %v946
        %v949 = vcombine.high %v331, %v331
        %v951 = vunpack.c.l.s4 1983009808
        %v952 = vunpack.c.0.s8 %v951
        %v953 = vlaneseq
        %v954 = vshrl.u32 %v953, 7
        %v955 = vsub.s32 %v952, %v954
        %v956 = vrot.slane %v331, %v955
        %v958 = vunpack.c.l.s4 1983009808
        %v959 = vunpack.c.0.s8 %v958
        %v960 = vlaneseq
        %v961 = vshrl.u32 %v960, 7
        %v962 = vsub.s32 %v959, %v961
        %v963 = vrot.slane %v949, %v962
        %v964 = vcombine.high %v956, %v956
        %v965 = vcombine.high %v963, %v963
        %v967 = vunpack.c.l.s4 1983009808
        %v968 = vunpack.c.0.s8 %v967
        %v969 = vlaneseq
        %v970 = vshrl.u32 %v969, 7
        %v971 = vsub.s32 %v968, %v970
        %v972 = vrot.slane %v332, %v971
        %v973 = vcombine.high %v333, %v333
        %v975 = vunpack.c.l.s4 1983009808
        %v976 = vunpack.c.0.s8 %v975
        %v977 = vlaneseq
        %v978 = vshrl.u32 %v977, 7
        %v979 = vsub.s32 %v976, %v978
        %v980 = vrot.slane %v333, %v979
        %v982 = vunpack.c.l.s4 1983009808
        %v983 = vunpack.c.0.s8 %v982
        %v984 = vlaneseq
        %v985 = vshrl.u32 %v984, 7
        %v986 = vsub.s32 %v983, %v985
        %v987 = vrot.slane %v973, %v986
        %v988 = vcombine.high %v980, %v980
        %v989 = vcombine.high %v987, %v987
        %v990 = vcombine.high %v334, %v334
        %v992 = vunpack.c.l.s4 1983009808
        %v993 = vunpack.c.0.s8 %v992
        %v994 = vlaneseq
        %v995 = vshrl.u32 %v994, 7
        %v996 = vsub.s32 %v993, %v995
        %v997 = vrot.slane %v334, %v996
        %v999 = vunpack.c.l.s4 1983009808
        %v1000 = vunpack.c.0.s8 %v999
        %v1001 = vlaneseq
        %v1002 = vshrl.u32 %v1001, 7
        %v1003 = vsub.s32 %v1000, %v1002
        %v1004 = vrot.slane %v990, %v1003
        %v1005 = vcombine.high %v997, %v997
        %v1006 = vcombine.high %v1004, %v1004
        %v1008 = vunpack.c.l.s4 1983009808
        %v1009 = vunpack.c.0.s8 %v1008
        %v1010 = vlaneseq
        %v1011 = vshrl.u32 %v1010, 7
        %v1012 = vsub.s32 %v1009, %v1011
        %v1013 = vrot.slane %v335, %v1012
        %v1014 = vcombine.high %v336, %v336
        %v1016 = vunpack.c.l.s4 1983009808
        %v1017 = vunpack.c.0.s8 %v1016
        %v1018 = vlaneseq
        %v1019 = vshrl.u32 %v1018, 7
        %v1020 = vsub.s32 %v1017, %v1019
        %v1021 = vrot.slane %v336, %v1020
        %v1023 = vunpack.c.l.s4 1983009808
        %v1024 = vunpack.c.0.s8 %v1023
        %v1025 = vlaneseq
        %v1026 = vshrl.u32 %v1025, 7
        %v1027 = vsub.s32 %v1024, %v1026
        %v1028 = vrot.slane %v1014, %v1027
        %v1029 = vcombine.high %v1021, %v1021
        %v1030 = vcombine.high %v1028, %v1028
        %v1031 = vcombine.high %v337, %v337
        %v1033 = vunpack.c.l.s4 1983009808
        %v1034 = vunpack.c.0.s8 %v1033
        %v1035 = vlaneseq
        %v1036 = vshrl.u32 %v1035, 7
        %v1037 = vsub.s32 %v1034, %v1036
        %v1038 = vrot.slane %v337, %v1037
        %v1040 = vunpack.c.l.s4 1983009808
        %v1041 = vunpack.c.0.s8 %v1040
        %v1042 = vlaneseq
        %v1043 = vshrl.u32 %v1042, 7
        %v1044 = vsub.s32 %v1041, %v1043
        %v1045 = vrot.slane %v1031, %v1044
        %v1046 = vcombine.high %v1038, %v1038
        %v1047 = vcombine.high %v1045, %v1045
        %v1049 = vunpack.c.l.s4 1983009808
        %v1050 = vunpack.c.0.s8 %v1049
        %v1051 = vlaneseq
        %v1052 = vshrl.u32 %v1051, 7
        %v1053 = vsub.s32 %v1050, %v1052
        %v1054 = vrot.slane %v338, %v1053
        %v1055 = vcombine.high %v339, %v339
        %v1057 = vunpack.c.l.s4 1983009808
        %v1058 = vunpack.c.0.s8 %v1057
        %v1059 = vlaneseq
        %v1060 = vshrl.u32 %v1059, 7
        %v1061 = vsub.s32 %v1058, %v1060
        %v1062 = vrot.slane %v339, %v1061
        %v1064 = vunpack.c.l.s4 1983009808
        %v1065 = vunpack.c.0.s8 %v1064
        %v1066 = vlaneseq
        %v1067 = vshrl.u32 %v1066, 7
        %v1068 = vsub.s32 %v1065, %v1067
        %v1069 = vrot.slane %v1055, %v1068
        %v1070 = vcombine.high %v1062, %v1062
        %v1071 = vcombine.high %v1069, %v1069
        %v1072 = vcombine.high %v340, %v340
        %v1074 = vunpack.c.l.s4 1983009808
        %v1075 = vunpack.c.0.s8 %v1074
        %v1076 = vlaneseq
        %v1077 = vshrl.u32 %v1076, 7
        %v1078 = vsub.s32 %v1075, %v1077
        %v1079 = vrot.slane %v340, %v1078
        %v1081 = vunpack.c.l.s4 1983009808
        %v1082 = vunpack.c.0.s8 %v1081
        %v1083 = vlaneseq
        %v1084 = vshrl.u32 %v1083, 7
        %v1085 = vsub.s32 %v1082, %v1084
        %v1086 = vrot.slane %v1072, %v1085
        %v1087 = vcombine.high %v1079, %v1079
        %v1088 = vcombine.high %v1086, %v1086
        %v1090 = vunpack.c.l.s4 1983009808
        %v1091 = vunpack.c.0.s8 %v1090
        %v1092 = vlaneseq
        %v1093 = vshrl.u32 %v1092, 7
        %v1094 = vsub.s32 %v1091, %v1093
        %v1095 = vrot.slane %v341, %v1094
        %v1096 = vcombine.high %v342, %v342
        %v1098 = vunpack.c.l.s4 1983009808
        %v1099 = vunpack.c.0.s8 %v1098
        %v1100 = vlaneseq
        %v1101 = vshrl.u32 %v1100, 7
        %v1102 = vsub.s32 %v1099, %v1101
        %v1103 = vrot.slane %v342, %v1102
        %v1105 = vunpack.c.l.s4 1983009808
        %v1106 = vunpack.c.0.s8 %v1105
        %v1107 = vlaneseq
        %v1108 = vshrl.u32 %v1107, 7
        %v1109 = vsub.s32 %v1106, %v1108
        %v1110 = vrot.slane %v1096, %v1109
        %v1111 = vcombine.high %v1103, %v1103
        %v1112 = vcombine.high %v1110, %v1110
        %v1113 = vcombine.high %v343, %v343
        %v1115 = vunpack.c.l.s4 1983009808
        %v1116 = vunpack.c.0.s8 %v1115
        %v1117 = vlaneseq
        %v1118 = vshrl.u32 %v1117, 7
        %v1119 = vsub.s32 %v1116, %v1118
        %v1120 = vrot.slane %v343, %v1119
        %v1122 = vunpack.c.l.s4 1983009808
        %v1123 = vunpack.c.0.s8 %v1122
        %v1124 = vlaneseq
        %v1125 = vshrl.u32 %v1124, 7
        %v1126 = vsub.s32 %v1123, %v1125
        %v1127 = vrot.slane %v1113, %v1126
        %v1128 = vcombine.high %v1120, %v1120
        %v1129 = vcombine.high %v1127, %v1127
        %v1131 = vunpack.c.l.s4 1983009808
        %v1132 = vunpack.c.0.s8 %v1131
        %v1133 = vlaneseq
        %v1134 = vshrl.u32 %v1133, 7
        %v1135 = vsub.s32 %v1132, %v1134
        %v1136 = vrot.slane %v344, %v1135
        %v1137 = vcombine.low %v406, %v414
        %v1138 = vcombine.low %v413, %v415
        %v1140 = vunpack.c.l.s4 1983009808
        %v1141 = vunpack.c.0.s8 %v1140
        %v1142 = vlaneseq
        %v1143 = vshrl.u32 %v1142, 7
        %v1144 = vsub.s32 %v1141, %v1143
        %v1145 = vrot.slane %v1137, %v1144
        %v1147 = vunpack.c.l.s4 1983009808
        %v1148 = vunpack.c.0.s8 %v1147
        %v1149 = vlaneseq
        %v1150 = vshrl.u32 %v1149, 7
        %v1151 = vsub.s32 %v1148, %v1150
        %v1152 = vrot.slane %v1138, %v1151
        %v1153 = vcombine.low %v1145, %v1152
        %v1154 = vcombine.low %v423, %v431
        %v1155 = vcombine.low %v430, %v432
        %v1157 = vunpack.c.l.s4 1983009808
        %v1158 = vunpack.c.0.s8 %v1157
        %v1159 = vlaneseq
        %v1160 = vshrl.u32 %v1159, 7
        %v1161 = vsub.s32 %v1158, %v1160
        %v1162 = vrot.slane %v1154, %v1161
        %v1164 = vunpack.c.l.s4 1983009808
        %v1165 = vunpack.c.0.s8 %v1164
        %v1166 = vlaneseq
        %v1167 = vshrl.u32 %v1166, 7
        %v1168 = vsub.s32 %v1165, %v1167
        %v1169 = vrot.slane %v1155, %v1168
        %v1170 = vcombine.low %v1162, %v1169
        %v1171 = vcombine.low %v439, %v447
        %v1172 = vcombine.low %v455, %v454
        %v1174 = vunpack.c.l.s4 1983009808
        %v1175 = vunpack.c.0.s8 %v1174
        %v1176 = vlaneseq
        %v1177 = vshrl.u32 %v1176, 7
        %v1178 = vsub.s32 %v1175, %v1177
        %v1179 = vrot.slane %v1171, %v1178
        %v1181 = vunpack.c.l.s4 1983009808
        %v1182 = vunpack.c.0.s8 %v1181
        %v1183 = vlaneseq
        %v1184 = vshrl.u32 %v1183, 7
        %v1185 = vsub.s32 %v1182, %v1184
        %v1186 = vrot.slane %v1172, %v1185
        %v1187 = vcombine.low %v1179, %v1186
        %v1188 = vcombine.low %v456, %v464
        %v1189 = vcombine.low %v472, %v471
        %v1191 = vunpack.c.l.s4 1983009808
        %v1192 = vunpack.c.0.s8 %v1191
        %v1193 = vlaneseq
        %v1194 = vshrl.u32 %v1193, 7
        %v1195 = vsub.s32 %v1192, %v1194
        %v1196 = vrot.slane %v1188, %v1195
        %v1198 = vunpack.c.l.s4 1983009808
        %v1199 = vunpack.c.0.s8 %v1198
        %v1200 = vlaneseq
        %v1201 = vshrl.u32 %v1200, 7
        %v1202 = vsub.s32 %v1199, %v1201
        %v1203 = vrot.slane %v1189, %v1202
        %v1204 = vcombine.low %v1196, %v1203
        %v1205 = vcombine.low %v473, %v480
        %v1206 = vcombine.low %v488, %v496
        %v1208 = vunpack.c.l.s4 1983009808
        %v1209 = vunpack.c.0.s8 %v1208
        %v1210 = vlaneseq
        %v1211 = vshrl.u32 %v1210, 7
        %v1212 = vsub.s32 %v1209, %v1211
        %v1213 = vrot.slane %v1205, %v1212
        %v1215 = vunpack.c.l.s4 1983009808
        %v1216 = vunpack.c.0.s8 %v1215
        %v1217 = vlaneseq
        %v1218 = vshrl.u32 %v1217, 7
        %v1219 = vsub.s32 %v1216, %v1218
        %v1220 = vrot.slane %v1206, %v1219
        %v1221 = vcombine.low %v1213, %v1220
        %v1222 = vcombine.low %v495, %v497
        %v1223 = vcombine.low %v505, %v513
        %v1225 = vunpack.c.l.s4 1983009808
        %v1226 = vunpack.c.0.s8 %v1225
        %v1227 = vlaneseq
        %v1228 = vshrl.u32 %v1227, 7
        %v1229 = vsub.s32 %v1226, %v1228
        %v1230 = vrot.slane %v1222, %v1229
        %v1232 = vunpack.c.l.s4 1983009808
        %v1233 = vunpack.c.0.s8 %v1232
        %v1234 = vlaneseq
        %v1235 = vshrl.u32 %v1234, 7
        %v1236 = vsub.s32 %v1233, %v1235
        %v1237 = vrot.slane %v1223, %v1236
        %v1238 = vcombine.low %v1230, %v1237
        %v1239 = vcombine.low %v512, %v514
        %v1240 = vcombine.low %v521, %v529
        %v1242 = vunpack.c.l.s4 1983009808
        %v1243 = vunpack.c.0.s8 %v1242
        %v1244 = vlaneseq
        %v1245 = vshrl.u32 %v1244, 7
        %v1246 = vsub.s32 %v1243, %v1245
        %v1247 = vrot.slane %v1239, %v1246
        %v1249 = vunpack.c.l.s4 1983009808
        %v1250 = vunpack.c.0.s8 %v1249
        %v1251 = vlaneseq
        %v1252 = vshrl.u32 %v1251, 7
        %v1253 = vsub.s32 %v1250, %v1252
        %v1254 = vrot.slane %v1240, %v1253
        %v1255 = vcombine.low %v1247, %v1254
        %v1256 = vcombine.low %v537, %v536
        %v1257 = vcombine.low %v538, %v546
        %v1259 = vunpack.c.l.s4 1983009808
        %v1260 = vunpack.c.0.s8 %v1259
        %v1261 = vlaneseq
        %v1262 = vshrl.u32 %v1261, 7
        %v1263 = vsub.s32 %v1260, %v1262
        %v1264 = vrot.slane %v1256, %v1263
        %v1266 = vunpack.c.l.s4 1983009808
        %v1267 = vunpack.c.0.s8 %v1266
        %v1268 = vlaneseq
        %v1269 = vshrl.u32 %v1268, 7
        %v1270 = vsub.s32 %v1267, %v1269
        %v1271 = vrot.slane %v1257, %v1270
        %v1272 = vcombine.low %v1264, %v1271
        %v1273 = vcombine.low %v554, %v553
        %v1274 = vcombine.low %v555, %v562
        %v1276 = vunpack.c.l.s4 1983009808
        %v1277 = vunpack.c.0.s8 %v1276
        %v1278 = vlaneseq
        %v1279 = vshrl.u32 %v1278, 7
        %v1280 = vsub.s32 %v1277, %v1279
        %v1281 = vrot.slane %v1273, %v1280
        %v1283 = vunpack.c.l.s4 1983009808
        %v1284 = vunpack.c.0.s8 %v1283
        %v1285 = vlaneseq
        %v1286 = vshrl.u32 %v1285, 7
        %v1287 = vsub.s32 %v1284, %v1286
        %v1288 = vrot.slane %v1274, %v1287
        %v1289 = vcombine.low %v1281, %v1288
        %v1290 = vcombine.low %v570, %v578
        %v1291 = vcombine.low %v577, %v579
        %v1293 = vunpack.c.l.s4 1983009808
        %v1294 = vunpack.c.0.s8 %v1293
        %v1295 = vlaneseq
        %v1296 = vshrl.u32 %v1295, 7
        %v1297 = vsub.s32 %v1294, %v1296
        %v1298 = vrot.slane %v1290, %v1297
        %v1300 = vunpack.c.l.s4 1983009808
        %v1301 = vunpack.c.0.s8 %v1300
        %v1302 = vlaneseq
        %v1303 = vshrl.u32 %v1302, 7
        %v1304 = vsub.s32 %v1301, %v1303
        %v1305 = vrot.slane %v1291, %v1304
        %v1306 = vcombine.low %v1298, %v1305
        %v1307 = vcombine.low %v587, %v595
        %v1308 = vcombine.low %v594, %v596
        %v1310 = vunpack.c.l.s4 1983009808
        %v1311 = vunpack.c.0.s8 %v1310
        %v1312 = vlaneseq
        %v1313 = vshrl.u32 %v1312, 7
        %v1314 = vsub.s32 %v1311, %v1313
        %v1315 = vrot.slane %v1307, %v1314
        %v1317 = vunpack.c.l.s4 1983009808
        %v1318 = vunpack.c.0.s8 %v1317
        %v1319 = vlaneseq
        %v1320 = vshrl.u32 %v1319, 7
        %v1321 = vsub.s32 %v1318, %v1320
        %v1322 = vrot.slane %v1308, %v1321
        %v1323 = vcombine.low %v1315, %v1322
        %v1324 = vcombine.low %v603, %v611
        %v1325 = vcombine.low %v619, %v618
        %v1327 = vunpack.c.l.s4 1983009808
        %v1328 = vunpack.c.0.s8 %v1327
        %v1329 = vlaneseq
        %v1330 = vshrl.u32 %v1329, 7
        %v1331 = vsub.s32 %v1328, %v1330
        %v1332 = vrot.slane %v1324, %v1331
        %v1334 = vunpack.c.l.s4 1983009808
        %v1335 = vunpack.c.0.s8 %v1334
        %v1336 = vlaneseq
        %v1337 = vshrl.u32 %v1336, 7
        %v1338 = vsub.s32 %v1335, %v1337
        %v1339 = vrot.slane %v1325, %v1338
        %v1340 = vcombine.low %v1332, %v1339
        %v1341 = vcombine.low %v620, %v628
        %v1342 = vcombine.low %v636, %v635
        %v1344 = vunpack.c.l.s4 1983009808
        %v1345 = vunpack.c.0.s8 %v1344
        %v1346 = vlaneseq
        %v1347 = vshrl.u32 %v1346, 7
        %v1348 = vsub.s32 %v1345, %v1347
        %v1349 = vrot.slane %v1341, %v1348
        %v1351 = vunpack.c.l.s4 1983009808
        %v1352 = vunpack.c.0.s8 %v1351
        %v1353 = vlaneseq
        %v1354 = vshrl.u32 %v1353, 7
        %v1355 = vsub.s32 %v1352, %v1354
        %v1356 = vrot.slane %v1342, %v1355
        %v1357 = vcombine.low %v1349, %v1356
        %v1358 = vcombine.low %v637, %v644
        %v1359 = vcombine.low %v652, %v660
        %v1361 = vunpack.c.l.s4 1983009808
        %v1362 = vunpack.c.0.s8 %v1361
        %v1363 = vlaneseq
        %v1364 = vshrl.u32 %v1363, 7
        %v1365 = vsub.s32 %v1362, %v1364
        %v1366 = vrot.slane %v1358, %v1365
        %v1368 = vunpack.c.l.s4 1983009808
        %v1369 = vunpack.c.0.s8 %v1368
        %v1370 = vlaneseq
        %v1371 = vshrl.u32 %v1370, 7
        %v1372 = vsub.s32 %v1369, %v1371
        %v1373 = vrot.slane %v1359, %v1372
        %v1374 = vcombine.low %v1366, %v1373
        %v1375 = vcombine.low %v659, %v661
        %v1376 = vcombine.low %v669, %v677
        %v1378 = vunpack.c.l.s4 1983009808
        %v1379 = vunpack.c.0.s8 %v1378
        %v1380 = vlaneseq
        %v1381 = vshrl.u32 %v1380, 7
        %v1382 = vsub.s32 %v1379, %v1381
        %v1383 = vrot.slane %v1375, %v1382
        %v1385 = vunpack.c.l.s4 1983009808
        %v1386 = vunpack.c.0.s8 %v1385
        %v1387 = vlaneseq
        %v1388 = vshrl.u32 %v1387, 7
        %v1389 = vsub.s32 %v1386, %v1388
        %v1390 = vrot.slane %v1376, %v1389
        %v1391 = vcombine.low %v1383, %v1390
        %v1392 = vcombine.low %v676, %v678
        %v1393 = vcombine.low %v685, %v693
        %v1395 = vunpack.c.l.s4 1983009808
        %v1396 = vunpack.c.0.s8 %v1395
        %v1397 = vlaneseq
        %v1398 = vshrl.u32 %v1397, 7
        %v1399 = vsub.s32 %v1396, %v1398
        %v1400 = vrot.slane %v1392, %v1399
        %v1402 = vunpack.c.l.s4 1983009808
        %v1403 = vunpack.c.0.s8 %v1402
        %v1404 = vlaneseq
        %v1405 = vshrl.u32 %v1404, 7
        %v1406 = vsub.s32 %v1403, %v1405
        %v1407 = vrot.slane %v1393, %v1406
        %v1408 = vcombine.low %v1400, %v1407
        %v1409 = vcombine.low %v701, %v700
        %v1410 = vcombine.low %v702, %v710
        %v1412 = vunpack.c.l.s4 1983009808
        %v1413 = vunpack.c.0.s8 %v1412
        %v1414 = vlaneseq
        %v1415 = vshrl.u32 %v1414, 7
        %v1416 = vsub.s32 %v1413, %v1415
        %v1417 = vrot.slane %v1409, %v1416
        %v1419 = vunpack.c.l.s4 1983009808
        %v1420 = vunpack.c.0.s8 %v1419
        %v1421 = vlaneseq
        %v1422 = vshrl.u32 %v1421, 7
        %v1423 = vsub.s32 %v1420, %v1422
        %v1424 = vrot.slane %v1410, %v1423
        %v1425 = vcombine.low %v1417, %v1424
        %v1426 = vcombine.low %v718, %v717
        %v1427 = vcombine.low %v719, %v726
        %v1429 = vunpack.c.l.s4 1983009808
        %v1430 = vunpack.c.0.s8 %v1429
        %v1431 = vlaneseq
        %v1432 = vshrl.u32 %v1431, 7
        %v1433 = vsub.s32 %v1430, %v1432
        %v1434 = vrot.slane %v1426, %v1433
        %v1436 = vunpack.c.l.s4 1983009808
        %v1437 = vunpack.c.0.s8 %v1436
        %v1438 = vlaneseq
        %v1439 = vshrl.u32 %v1438, 7
        %v1440 = vsub.s32 %v1437, %v1439
        %v1441 = vrot.slane %v1427, %v1440
        %v1442 = vcombine.low %v1434, %v1441
        %v1443 = vcombine.low %v734, %v742
        %v1444 = vcombine.low %v741, %v743
        %v1446 = vunpack.c.l.s4 1983009808
        %v1447 = vunpack.c.0.s8 %v1446
        %v1448 = vlaneseq
        %v1449 = vshrl.u32 %v1448, 7
        %v1450 = vsub.s32 %v1447, %v1449
        %v1451 = vrot.slane %v1443, %v1450
        %v1453 = vunpack.c.l.s4 1983009808
        %v1454 = vunpack.c.0.s8 %v1453
        %v1455 = vlaneseq
        %v1456 = vshrl.u32 %v1455, 7
        %v1457 = vsub.s32 %v1454, %v1456
        %v1458 = vrot.slane %v1444, %v1457
        %v1459 = vcombine.low %v1451, %v1458
        %v1460 = vcombine.low %v751, %v759
        %v1461 = vcombine.low %v758, %v760
        %v1463 = vunpack.c.l.s4 1983009808
        %v1464 = vunpack.c.0.s8 %v1463
        %v1465 = vlaneseq
        %v1466 = vshrl.u32 %v1465, 7
        %v1467 = vsub.s32 %v1464, %v1466
        %v1468 = vrot.slane %v1460, %v1467
        %v1470 = vunpack.c.l.s4 1983009808
        %v1471 = vunpack.c.0.s8 %v1470
        %v1472 = vlaneseq
        %v1473 = vshrl.u32 %v1472, 7
        %v1474 = vsub.s32 %v1471, %v1473
        %v1475 = vrot.slane %v1461, %v1474
        %v1476 = vcombine.low %v1468, %v1475
        %v1477 = vcombine.low %v767, %v775
        %v1478 = vcombine.low %v783, %v782
        %v1480 = vunpack.c.l.s4 1983009808
        %v1481 = vunpack.c.0.s8 %v1480
        %v1482 = vlaneseq
        %v1483 = vshrl.u32 %v1482, 7
        %v1484 = vsub.s32 %v1481, %v1483
        %v1485 = vrot.slane %v1477, %v1484
        %v1487 = vunpack.c.l.s4 1983009808
        %v1488 = vunpack.c.0.s8 %v1487
        %v1489 = vlaneseq
        %v1490 = vshrl.u32 %v1489, 7
        %v1491 = vsub.s32 %v1488, %v1490
        %v1492 = vrot.slane %v1478, %v1491
        %v1493 = vcombine.low %v1485, %v1492
        %v1494 = vcombine.low %v784, %v792
        %v1495 = vcombine.low %v800, %v799
        %v1497 = vunpack.c.l.s4 1983009808
        %v1498 = vunpack.c.0.s8 %v1497
        %v1499 = vlaneseq
        %v1500 = vshrl.u32 %v1499, 7
        %v1501 = vsub.s32 %v1498, %v1500
        %v1502 = vrot.slane %v1494, %v1501
        %v1504 = vunpack.c.l.s4 1983009808
        %v1505 = vunpack.c.0.s8 %v1504
        %v1506 = vlaneseq
        %v1507 = vshrl.u32 %v1506, 7
        %v1508 = vsub.s32 %v1505, %v1507
        %v1509 = vrot.slane %v1495, %v1508
        %v1510 = vcombine.low %v1502, %v1509
        %v1511 = vcombine.low %v801, %v808
        %v1512 = vcombine.low %v816, %v824
        %v1514 = vunpack.c.l.s4 1983009808
        %v1515 = vunpack.c.0.s8 %v1514
        %v1516 = vlaneseq
        %v1517 = vshrl.u32 %v1516, 7
        %v1518 = vsub.s32 %v1515, %v1517
        %v1519 = vrot.slane %v1511, %v1518
        %v1521 = vunpack.c.l.s4 1983009808
        %v1522 = vunpack.c.0.s8 %v1521
        %v1523 = vlaneseq
        %v1524 = vshrl.u32 %v1523, 7
        %v1525 = vsub.s32 %v1522, %v1524
        %v1526 = vrot.slane %v1512, %v1525
        %v1527 = vcombine.low %v1519, %v1526
        %v1528 = vcombine.low %v823, %v825
        %v1529 = vcombine.low %v833, %v841
        %v1531 = vunpack.c.l.s4 1983009808
        %v1532 = vunpack.c.0.s8 %v1531
        %v1533 = vlaneseq
        %v1534 = vshrl.u32 %v1533, 7
        %v1535 = vsub.s32 %v1532, %v1534
        %v1536 = vrot.slane %v1528, %v1535
        %v1538 = vunpack.c.l.s4 1983009808
        %v1539 = vunpack.c.0.s8 %v1538
        %v1540 = vlaneseq
        %v1541 = vshrl.u32 %v1540, 7
        %v1542 = vsub.s32 %v1539, %v1541
        %v1543 = vrot.slane %v1529, %v1542
        %v1544 = vcombine.low %v1536, %v1543
        %v1545 = vcombine.low %v840, %v842
        %v1546 = vcombine.low %v849, %v857
        %v1548 = vunpack.c.l.s4 1983009808
        %v1549 = vunpack.c.0.s8 %v1548
        %v1550 = vlaneseq
        %v1551 = vshrl.u32 %v1550, 7
        %v1552 = vsub.s32 %v1549, %v1551
        %v1553 = vrot.slane %v1545, %v1552
        %v1555 = vunpack.c.l.s4 1983009808
        %v1556 = vunpack.c.0.s8 %v1555
        %v1557 = vlaneseq
        %v1558 = vshrl.u32 %v1557, 7
        %v1559 = vsub.s32 %v1556, %v1558
        %v1560 = vrot.slane %v1546, %v1559
        %v1561 = vcombine.low %v1553, %v1560
        %v1562 = vcombine.low %v865, %v864
        %v1563 = vcombine.low %v866, %v874
        %v1565 = vunpack.c.l.s4 1983009808
        %v1566 = vunpack.c.0.s8 %v1565
        %v1567 = vlaneseq
        %v1568 = vshrl.u32 %v1567, 7
        %v1569 = vsub.s32 %v1566, %v1568
        %v1570 = vrot.slane %v1562, %v1569
        %v1572 = vunpack.c.l.s4 1983009808
        %v1573 = vunpack.c.0.s8 %v1572
        %v1574 = vlaneseq
        %v1575 = vshrl.u32 %v1574, 7
        %v1576 = vsub.s32 %v1573, %v1575
        %v1577 = vrot.slane %v1563, %v1576
        %v1578 = vcombine.low %v1570, %v1577
        %v1579 = vcombine.low %v882, %v881
        %v1580 = vcombine.low %v883, %v890
        %v1582 = vunpack.c.l.s4 1983009808
        %v1583 = vunpack.c.0.s8 %v1582
        %v1584 = vlaneseq
        %v1585 = vshrl.u32 %v1584, 7
        %v1586 = vsub.s32 %v1583, %v1585
        %v1587 = vrot.slane %v1579, %v1586
        %v1589 = vunpack.c.l.s4 1983009808
        %v1590 = vunpack.c.0.s8 %v1589
        %v1591 = vlaneseq
        %v1592 = vshrl.u32 %v1591, 7
        %v1593 = vsub.s32 %v1590, %v1592
        %v1594 = vrot.slane %v1580, %v1593
        %v1595 = vcombine.low %v1587, %v1594
        %v1596 = vcombine.low %v898, %v906
        %v1597 = vcombine.low %v905, %v907
        %v1599 = vunpack.c.l.s4 1983009808
        %v1600 = vunpack.c.0.s8 %v1599
        %v1601 = vlaneseq
        %v1602 = vshrl.u32 %v1601, 7
        %v1603 = vsub.s32 %v1600, %v1602
        %v1604 = vrot.slane %v1596, %v1603
        %v1606 = vunpack.c.l.s4 1983009808
        %v1607 = vunpack.c.0.s8 %v1606
        %v1608 = vlaneseq
        %v1609 = vshrl.u32 %v1608, 7
        %v1610 = vsub.s32 %v1607, %v1609
        %v1611 = vrot.slane %v1597, %v1610
        %v1612 = vcombine.low %v1604, %v1611
        %v1613 = vcombine.low %v915, %v923
        %v1614 = vcombine.low %v922, %v924
        %v1616 = vunpack.c.l.s4 1983009808
        %v1617 = vunpack.c.0.s8 %v1616
        %v1618 = vlaneseq
        %v1619 = vshrl.u32 %v1618, 7
        %v1620 = vsub.s32 %v1617, %v1619
        %v1621 = vrot.slane %v1613, %v1620
        %v1623 = vunpack.c.l.s4 1983009808
        %v1624 = vunpack.c.0.s8 %v1623
        %v1625 = vlaneseq
        %v1626 = vshrl.u32 %v1625, 7
        %v1627 = vsub.s32 %v1624, %v1626
        %v1628 = vrot.slane %v1614, %v1627
        %v1629 = vcombine.low %v1621, %v1628
        %v1630 = vcombine.low %v931, %v939
        %v1631 = vcombine.low %v947, %v946
        %v1633 = vunpack.c.l.s4 1983009808
        %v1634 = vunpack.c.0.s8 %v1633
        %v1635 = vlaneseq
        %v1636 = vshrl.u32 %v1635, 7
        %v1637 = vsub.s32 %v1634, %v1636
        %v1638 = vrot.slane %v1630, %v1637
        %v1640 = vunpack.c.l.s4 1983009808
        %v1641 = vunpack.c.0.s8 %v1640
        %v1642 = vlaneseq
        %v1643 = vshrl.u32 %v1642, 7
        %v1644 = vsub.s32 %v1641, %v1643
        %v1645 = vrot.slane %v1631, %v1644
        %v1646 = vcombine.low %v1638, %v1645
        %v1647 = vcombine.low %v948, %v956
        %v1648 = vcombine.low %v964, %v963
        %v1650 = vunpack.c.l.s4 1983009808
        %v1651 = vunpack.c.0.s8 %v1650
        %v1652 = vlaneseq
        %v1653 = vshrl.u32 %v1652, 7
        %v1654 = vsub.s32 %v1651, %v1653
        %v1655 = vrot.slane %v1647, %v1654
        %v1657 = vunpack.c.l.s4 1983009808
        %v1658 = vunpack.c.0.s8 %v1657
        %v1659 = vlaneseq
        %v1660 = vshrl.u32 %v1659, 7
        %v1661 = vsub.s32 %v1658, %v1660
        %v1662 = vrot.slane %v1648, %v1661
        %v1663 = vcombine.low %v1655, %v1662
        %v1664 = vcombine.low %v965, %v972
        %v1665 = vcombine.low %v980, %v988
        %v1667 = vunpack.c.l.s4 1983009808
        %v1668 = vunpack.c.0.s8 %v1667
        %v1669 = vlaneseq
        %v1670 = vshrl.u32 %v1669, 7
        %v1671 = vsub.s32 %v1668, %v1670
        %v1672 = vrot.slane %v1664, %v1671
        %v1674 = vunpack.c.l.s4 1983009808
        %v1675 = vunpack.c.0.s8 %v1674
        %v1676 = vlaneseq
        %v1677 = vshrl.u32 %v1676, 7
        %v1678 = vsub.s32 %v1675, %v1677
        %v1679 = vrot.slane %v1665, %v1678
        %v1680 = vcombine.low %v1672, %v1679
        %v1681 = vcombine.low %v987, %v989
        %v1682 = vcombine.low %v997, %v1005
        %v1684 = vunpack.c.l.s4 1983009808
        %v1685 = vunpack.c.0.s8 %v1684
        %v1686 = vlaneseq
        %v1687 = vshrl.u32 %v1686, 7
        %v1688 = vsub.s32 %v1685, %v1687
        %v1689 = vrot.slane %v1681, %v1688
        %v1691 = vunpack.c.l.s4 1983009808
        %v1692 = vunpack.c.0.s8 %v1691
        %v1693 = vlaneseq
        %v1694 = vshrl.u32 %v1693, 7
        %v1695 = vsub.s32 %v1692, %v1694
        %v1696 = vrot.slane %v1682, %v1695
        %v1697 = vcombine.low %v1689, %v1696
        %v1698 = vcombine.low %v1004, %v1006
        %v1699 = vcombine.low %v1013, %v1021
        %v1701 = vunpack.c.l.s4 1983009808
        %v1702 = vunpack.c.0.s8 %v1701
        %v1703 = vlaneseq
        %v1704 = vshrl.u32 %v1703, 7
        %v1705 = vsub.s32 %v1702, %v1704
        %v1706 = vrot.slane %v1698, %v1705
        %v1708 = vunpack.c.l.s4 1983009808
        %v1709 = vunpack.c.0.s8 %v1708
        %v1710 = vlaneseq
        %v1711 = vshrl.u32 %v1710, 7
        %v1712 = vsub.s32 %v1709, %v1711
        %v1713 = vrot.slane %v1699, %v1712
        %v1714 = vcombine.low %v1706, %v1713
        %v1715 = vcombine.low %v1029, %v1028
        %v1716 = vcombine.low %v1030, %v1038
        %v1718 = vunpack.c.l.s4 1983009808
        %v1719 = vunpack.c.0.s8 %v1718
        %v1720 = vlaneseq
        %v1721 = vshrl.u32 %v1720, 7
        %v1722 = vsub.s32 %v1719, %v1721
        %v1723 = vrot.slane %v1715, %v1722
        %v1725 = vunpack.c.l.s4 1983009808
        %v1726 = vunpack.c.0.s8 %v1725
        %v1727 = vlaneseq
        %v1728 = vshrl.u32 %v1727, 7
        %v1729 = vsub.s32 %v1726, %v1728
        %v1730 = vrot.slane %v1716, %v1729
        %v1731 = vcombine.low %v1723, %v1730
        %v1732 = vcombine.low %v1046, %v1045
        %v1733 = vcombine.low %v1047, %v1054
        %v1735 = vunpack.c.l.s4 1983009808
        %v1736 = vunpack.c.0.s8 %v1735
        %v1737 = vlaneseq
        %v1738 = vshrl.u32 %v1737, 7
        %v1739 = vsub.s32 %v1736, %v1738
        %v1740 = vrot.slane %v1732, %v1739
        %v1742 = vunpack.c.l.s4 1983009808
        %v1743 = vunpack.c.0.s8 %v1742
        %v1744 = vlaneseq
        %v1745 = vshrl.u32 %v1744, 7
        %v1746 = vsub.s32 %v1743, %v1745
        %v1747 = vrot.slane %v1733, %v1746
        %v1748 = vcombine.low %v1740, %v1747
        %v1749 = vcombine.low %v1062, %v1070
        %v1750 = vcombine.low %v1069, %v1071
        %v1752 = vunpack.c.l.s4 1983009808
        %v1753 = vunpack.c.0.s8 %v1752
        %v1754 = vlaneseq
        %v1755 = vshrl.u32 %v1754, 7
        %v1756 = vsub.s32 %v1753, %v1755
        %v1757 = vrot.slane %v1749, %v1756
        %v1759 = vunpack.c.l.s4 1983009808
        %v1760 = vunpack.c.0.s8 %v1759
        %v1761 = vlaneseq
        %v1762 = vshrl.u32 %v1761, 7
        %v1763 = vsub.s32 %v1760, %v1762
        %v1764 = vrot.slane %v1750, %v1763
        %v1765 = vcombine.low %v1757, %v1764
        %v1766 = vcombine.low %v1079, %v1087
        %v1767 = vcombine.low %v1086, %v1088
        %v1769 = vunpack.c.l.s4 1983009808
        %v1770 = vunpack.c.0.s8 %v1769
        %v1771 = vlaneseq
        %v1772 = vshrl.u32 %v1771, 7
        %v1773 = vsub.s32 %v1770, %v1772
        %v1774 = vrot.slane %v1766, %v1773
        %v1776 = vunpack.c.l.s4 1983009808
        %v1777 = vunpack.c.0.s8 %v1776
        %v1778 = vlaneseq
        %v1779 = vshrl.u32 %v1778, 7
        %v1780 = vsub.s32 %v1777, %v1779
        %v1781 = vrot.slane %v1767, %v1780
        %v1782 = vcombine.low %v1774, %v1781
        %v1783 = vcombine.low %v1095, %v1103
        %v1784 = vcombine.low %v1111, %v1110
        %v1786 = vunpack.c.l.s4 1983009808
        %v1787 = vunpack.c.0.s8 %v1786
        %v1788 = vlaneseq
        %v1789 = vshrl.u32 %v1788, 7
        %v1790 = vsub.s32 %v1787, %v1789
        %v1791 = vrot.slane %v1783, %v1790
        %v1793 = vunpack.c.l.s4 1983009808
        %v1794 = vunpack.c.0.s8 %v1793
        %v1795 = vlaneseq
        %v1796 = vshrl.u32 %v1795, 7
        %v1797 = vsub.s32 %v1794, %v1796
        %v1798 = vrot.slane %v1784, %v1797
        %v1799 = vcombine.low %v1791, %v1798
        %v1800 = vcombine.low %v1112, %v1120
        %v1801 = vcombine.low %v1128, %v1127
        %v1803 = vunpack.c.l.s4 1983009808
        %v1804 = vunpack.c.0.s8 %v1803
        %v1805 = vlaneseq
        %v1806 = vshrl.u32 %v1805, 7
        %v1807 = vsub.s32 %v1804, %v1806
        %v1808 = vrot.slane %v1800, %v1807
        %v1810 = vunpack.c.l.s4 1983009808
        %v1811 = vunpack.c.0.s8 %v1810
        %v1812 = vlaneseq
        %v1813 = vshrl.u32 %v1812, 7
        %v1814 = vsub.s32 %v1811, %v1813
        %v1815 = vrot.slane %v1801, %v1814
        %v1816 = vcombine.low %v1808, %v1815
        %v1817 = vcombine.low %v1129, %v1136
        %v1819 = vunpack.c.l.s4 1983009808
        %v1820 = vunpack.c.0.s8 %v1819
        %v1821 = vlaneseq
        %v1822 = vshrl.u32 %v1821, 7
        %v1823 = vsub.s32 %v1820, %v1822
        %v1824 = vrot.slane %v1817, %v1823
        %v1866 = vpack.c.bf16 %v1170, %v1153
        %v1867 = vpack.c.bf16 %v1204, %v1187
        %v1868 = vpack.c.bf16 %v1238, %v1221
        %v1869 = vpack.c.bf16 %v1272, %v1255
        %v1870 = vpack.c.bf16 %v1306, %v1289
        %v1871 = vpack.c.bf16 %v1340, %v1323
        %v1872 = vpack.c.bf16 %v1374, %v1357
        %v1873 = vpack.c.bf16 %v1408, %v1391
        %v1874 = vpack.c.bf16 %v1442, %v1425
        %v1875 = vpack.c.bf16 %v1476, %v1459
        %v1876 = vpack.c.bf16 %v1510, %v1493
        %v1877 = vpack.c.bf16 %v1544, %v1527
        %v1878 = vpack.c.bf16 %v1578, %v1561
        %v1879 = vpack.c.bf16 %v1612, %v1595
        %v1880 = vpack.c.bf16 %v1646, %v1629
        %v1881 = vpack.c.bf16 %v1680, %v1663
        %v1882 = vpack.c.bf16 %v1714, %v1697
        %v1883 = vpack.c.bf16 %v1748, %v1731
        %v1884 = vpack.c.bf16 %v1782, %v1765
        %v1885 = vpack.c.bf16 %v1816, %v1799
        %v1886 = vpack.c.bf16 %v1824, %v1824
        %v1887 = vld [vmem:[%s1] sm:$0xf]
        %v1889 = vsel %vm170, %v1866, 0
        %v1892 = vsel %vm170, %v1867, 0
        %v1895 = vsel %vm170, %v1868, 0
        %v1898 = vsel %vm170, %v1869, 0
        %v1901 = vsel %vm170, %v1870, 0
        %v1904 = vsel %vm170, %v1871, 0
        %v1907 = vsel %vm170, %v1872, 0
        %v1910 = vsel %vm170, %v1873, 0
        %v1913 = vsel %vm170, %v1874, 0
        %v1916 = vsel %vm170, %v1875, 0
        %v1919 = vsel %vm170, %v1876, 0
        %v1922 = vsel %vm170, %v1877, 0
        %v1925 = vsel %vm170, %v1878, 0
        %v1928 = vsel %vm170, %v1879, 0
        %v1931 = vsel %vm170, %v1880, 0
        %v1934 = vsel %vm170, %v1881, 0
        %v1937 = vsel %vm170, %v1882, 0
        %v1940 = vsel %vm170, %v1883, 0
        %v1943 = vsel %vm170, %v1884, 0
        %v1946 = vsel %vm170, %v1885, 0
        %v1949 = vsel %vm170, %v1886, 0
        %vm1951 = vcmask 1043456
        %v1953 = vsel %vm1951, %v1887, 0
        %1955 = vmatprep.subr.bf16.mxu0 0
        %1956 = vmatpush1.bf16.msra.mxu0 0
        %1957 = vmatprep.subr.bf16.mxu0 0
        %1958 = vmatpush1.bf16.msra.mxu0 0
        %1959 = vmatprep.subr.bf16.mxu0 0
        %1960 = vmatpush1.bf16.msra.mxu0 0
        %1961 = vmatprep.subr.bf16.mxu0 0
        %1962 = vmatpush1.bf16.msra.mxu0 0
        %1963 = vmatprep.subr.bf16.mxu0 0
        %1964 = vmatpush1.bf16.msra.mxu0 0
        %1965 = vmatprep.subr.bf16.mxu0 0
        %1966 = vmatpush1.bf16.msra.mxu0 0
        %1967 = vmatprep.subr.bf16.mxu0 0
        %1968 = vmatpush1.bf16.msra.mxu0 0
        %1969 = vmatprep.subr.bf16.mxu0 0
        %1970 = vmatpush1.bf16.msra.mxu0 %v1953
        %1971 = vmatprep.subr.bf16.mxu0 0
        %1972 = vmatpush2.bf16.msra.mxu0 0
        %1973 = vmatprep.subr.bf16.mxu0 0
        %1974 = vmatpush2.bf16.msra.mxu0 0
        %1975 = vmatprep.subr.bf16.mxu0 0
        %1976 = vmatpush2.bf16.msra.mxu0 0
        %1977 = vmatprep.subr.bf16.mxu0 0
        %1978 = vmatpush2.bf16.msra.mxu0 0
        %1979 = vmatprep.subr.bf16.mxu0 0
        %1980 = vmatpush2.bf16.msra.mxu0 0
        %1981 = vmatprep.subr.bf16.mxu0 0
        %1982 = vmatpush2.bf16.msra.mxu0 0
        %1983 = vmatprep.subr.bf16.mxu0 0
        %1984 = vmatpush2.bf16.msra.mxu0 0
        %1985 = vmatprep.subr.bf16.mxu0 0
        %1986 = vmatpush2.bf16.msra.mxu0 0
        %1987 = vmatprep.mubr.bf16.mxu0 0
        %1988 = vmatmul.mubr.bf16.gmra.mxu0 %v1889
        %v1989 = vpop.f32.mrf.mxu0
        %v1990 = vadd.f32 0.0, %v1989
        %v1991 = vpop.f32.mrf.mxu0
        %v1992 = vpop.f32.mrf.mxu0
        %v1993 = vadd.f32 0.0, %v1992
        %v1994 = vpop.f32.mrf.mxu0
        %1995 = vmatprep.mubr.bf16.mxu0 0
        %1996 = vmatmul.mubr.bf16.gmra.mxu0 %v1892
        %v1997 = vpop.f32.mrf.mxu0
        %v1998 = vadd.f32 0.0, %v1997
        %v1999 = vpop.f32.mrf.mxu0
        %v2000 = vpop.f32.mrf.mxu0
        %v2001 = vadd.f32 0.0, %v2000
        %v2002 = vpop.f32.mrf.mxu0
        %2003 = vmatprep.mubr.bf16.mxu0 0
        %2004 = vmatmul.mubr.bf16.gmra.mxu0 %v1895
        %v2005 = vpop.f32.mrf.mxu0
        %v2006 = vadd.f32 0.0, %v2005
        %v2007 = vpop.f32.mrf.mxu0
        %v2008 = vpop.f32.mrf.mxu0
        %v2009 = vadd.f32 0.0, %v2008
        %v2010 = vpop.f32.mrf.mxu0
        %2011 = vmatprep.mubr.bf16.mxu0 0
        %2012 = vmatmul.mubr.bf16.gmra.mxu0 %v1898
        %v2013 = vpop.f32.mrf.mxu0
        %v2014 = vadd.f32 0.0, %v2013
        %v2015 = vpop.f32.mrf.mxu0
        %v2016 = vpop.f32.mrf.mxu0
        %v2017 = vadd.f32 0.0, %v2016
        %v2018 = vpop.f32.mrf.mxu0
        %2019 = vmatprep.mubr.bf16.mxu0 0
        %2020 = vmatmul.mubr.bf16.gmra.mxu0 %v1901
        %v2021 = vpop.f32.mrf.mxu0
        %v2022 = vadd.f32 0.0, %v2021
        %v2023 = vpop.f32.mrf.mxu0
        %v2024 = vpop.f32.mrf.mxu0
        %v2025 = vadd.f32 0.0, %v2024
        %v2026 = vpop.f32.mrf.mxu0
        %2027 = vmatprep.mubr.bf16.mxu0 0
        %2028 = vmatmul.mubr.bf16.gmra.mxu0 %v1904
        %v2029 = vpop.f32.mrf.mxu0
        %v2030 = vadd.f32 0.0, %v2029
        %v2031 = vpop.f32.mrf.mxu0
        %v2032 = vpop.f32.mrf.mxu0
        %v2033 = vadd.f32 0.0, %v2032
        %v2034 = vpop.f32.mrf.mxu0
        %2035 = vmatprep.mubr.bf16.mxu0 0
        %2036 = vmatmul.mubr.bf16.gmra.mxu0 %v1907
        %v2037 = vpop.f32.mrf.mxu0
        %v2038 = vadd.f32 0.0, %v2037
        %v2039 = vpop.f32.mrf.mxu0
        %v2040 = vpop.f32.mrf.mxu0
        %v2041 = vadd.f32 0.0, %v2040
        %v2042 = vpop.f32.mrf.mxu0
        %2043 = vmatprep.mubr.bf16.mxu0 0
        %2044 = vmatmul.mubr.bf16.gmra.mxu0 %v1910
        %v2045 = vpop.f32.mrf.mxu0
        %v2046 = vadd.f32 0.0, %v2045
        %v2047 = vpop.f32.mrf.mxu0
        %v2048 = vpop.f32.mrf.mxu0
        %v2049 = vadd.f32 0.0, %v2048
        %v2050 = vpop.f32.mrf.mxu0
        %2051 = vmatprep.mubr.bf16.mxu0 0
        %2052 = vmatmul.mubr.bf16.gmra.mxu0 %v1913
        %v2053 = vpop.f32.mrf.mxu0
        %v2054 = vadd.f32 0.0, %v2053
        %v2055 = vpop.f32.mrf.mxu0
        %v2056 = vpop.f32.mrf.mxu0
        %v2057 = vadd.f32 0.0, %v2056
        %v2058 = vpop.f32.mrf.mxu0
        %2059 = vmatprep.mubr.bf16.mxu0 0
        %2060 = vmatmul.mubr.bf16.gmra.mxu0 %v1916
        %v2061 = vpop.f32.mrf.mxu0
        %v2062 = vadd.f32 0.0, %v2061
        %v2063 = vpop.f32.mrf.mxu0
        %v2064 = vpop.f32.mrf.mxu0
        %v2065 = vadd.f32 0.0, %v2064
        %v2066 = vpop.f32.mrf.mxu0
        %2067 = vmatprep.mubr.bf16.mxu0 0
        %2068 = vmatmul.mubr.bf16.gmra.mxu0 %v1919
        %v2069 = vpop.f32.mrf.mxu0
        %v2070 = vadd.f32 0.0, %v2069
        %v2071 = vpop.f32.mrf.mxu0
        %v2072 = vpop.f32.mrf.mxu0
        %v2073 = vadd.f32 0.0, %v2072
        %v2074 = vpop.f32.mrf.mxu0
        %2075 = vmatprep.mubr.bf16.mxu0 0
        %2076 = vmatmul.mubr.bf16.gmra.mxu0 %v1922
        %v2077 = vpop.f32.mrf.mxu0
        %v2078 = vadd.f32 0.0, %v2077
        %v2079 = vpop.f32.mrf.mxu0
        %v2080 = vpop.f32.mrf.mxu0
        %v2081 = vadd.f32 0.0, %v2080
        %v2082 = vpop.f32.mrf.mxu0
        %2083 = vmatprep.mubr.bf16.mxu0 0
        %2084 = vmatmul.mubr.bf16.gmra.mxu0 %v1925
        %v2085 = vpop.f32.mrf.mxu0
        %v2086 = vadd.f32 0.0, %v2085
        %v2087 = vpop.f32.mrf.mxu0
        %v2088 = vpop.f32.mrf.mxu0
        %v2089 = vadd.f32 0.0, %v2088
        %v2090 = vpop.f32.mrf.mxu0
        %2091 = vmatprep.mubr.bf16.mxu0 0
        %2092 = vmatmul.mubr.bf16.gmra.mxu0 %v1928
        %v2093 = vpop.f32.mrf.mxu0
        %v2094 = vadd.f32 0.0, %v2093
        %v2095 = vpop.f32.mrf.mxu0
        %v2096 = vpop.f32.mrf.mxu0
        %v2097 = vadd.f32 0.0, %v2096
        %v2098 = vpop.f32.mrf.mxu0
        %2099 = vmatprep.mubr.bf16.mxu0 0
        %2100 = vmatmul.mubr.bf16.gmra.mxu0 %v1931
        %v2101 = vpop.f32.mrf.mxu0
        %v2102 = vadd.f32 0.0, %v2101
        %v2103 = vpop.f32.mrf.mxu0
        %v2104 = vpop.f32.mrf.mxu0
        %v2105 = vadd.f32 0.0, %v2104
        %v2106 = vpop.f32.mrf.mxu0
        %2107 = vmatprep.mubr.bf16.mxu0 0
        %2108 = vmatmul.mubr.bf16.gmra.mxu0 %v1934
        %v2109 = vpop.f32.mrf.mxu0
        %v2110 = vadd.f32 0.0, %v2109
        %v2111 = vpop.f32.mrf.mxu0
        %v2112 = vpop.f32.mrf.mxu0
        %v2113 = vadd.f32 0.0, %v2112
        %v2114 = vpop.f32.mrf.mxu0
        %2115 = vmatprep.mubr.bf16.mxu0 0
        %2116 = vmatmul.mubr.bf16.gmra.mxu0 %v1937
        %v2117 = vpop.f32.mrf.mxu0
        %v2118 = vadd.f32 0.0, %v2117
        %v2119 = vpop.f32.mrf.mxu0
        %v2120 = vpop.f32.mrf.mxu0
        %v2121 = vadd.f32 0.0, %v2120
        %v2122 = vpop.f32.mrf.mxu0
        %2123 = vmatprep.mubr.bf16.mxu0 0
        %2124 = vmatmul.mubr.bf16.gmra.mxu0 %v1940
        %v2125 = vpop.f32.mrf.mxu0
        %v2126 = vadd.f32 0.0, %v2125
        %v2127 = vpop.f32.mrf.mxu0
        %v2128 = vpop.f32.mrf.mxu0
        %v2129 = vadd.f32 0.0, %v2128
        %v2130 = vpop.f32.mrf.mxu0
        %2131 = vmatprep.mubr.bf16.mxu0 0
        %2132 = vmatmul.mubr.bf16.gmra.mxu0 %v1943
        %v2133 = vpop.f32.mrf.mxu0
        %v2134 = vadd.f32 0.0, %v2133
        %v2135 = vpop.f32.mrf.mxu0
        %v2136 = vpop.f32.mrf.mxu0
        %v2137 = vadd.f32 0.0, %v2136
        %v2138 = vpop.f32.mrf.mxu0
        %2139 = vmatprep.mubr.bf16.mxu0 0
        %2140 = vmatmul.mubr.bf16.gmra.mxu0 %v1946
        %v2141 = vpop.f32.mrf.mxu0
        %v2142 = vadd.f32 0.0, %v2141
        %v2143 = vpop.f32.mrf.mxu0
        %v2144 = vpop.f32.mrf.mxu0
        %v2145 = vadd.f32 0.0, %v2144
        %v2146 = vpop.f32.mrf.mxu0
        %2147 = vmatprep.mubr.bf16.mxu0 0
        %2148 = vmatmul.mubr.bf16.gmra.mxu0 %v1949
        %v2149 = vpop.f32.mrf.mxu0
        %v2150 = vadd.f32 0.0, %v2149
        %v2151 = vpop.f32.mrf.mxu0
        %v2152 = vpop.f32.mrf.mxu0
        %v2153 = vpop.f32.mrf.mxu0
        %2154 = vdwg.mxu0
        %v2155 = vmax.f32 %v1990, 0.0
        %v2156 = vmax.f32 %v1993, 0.0
        %v2157 = vmax.f32 %v1998, 0.0
        %v2158 = vmax.f32 %v2001, 0.0
        %v2159 = vmax.f32 %v2006, 0.0
        %v2160 = vmax.f32 %v2009, 0.0
        %v2161 = vmax.f32 %v2014, 0.0
        %v2162 = vmax.f32 %v2017, 0.0
        %v2163 = vmax.f32 %v2022, 0.0
        %v2164 = vmax.f32 %v2025, 0.0
        %v2165 = vmax.f32 %v2030, 0.0
        %v2166 = vmax.f32 %v2033, 0.0
        %v2167 = vmax.f32 %v2038, 0.0
        %v2168 = vmax.f32 %v2041, 0.0
        %v2169 = vmax.f32 %v2046, 0.0
        %v2170 = vmax.f32 %v2049, 0.0
        %v2171 = vmax.f32 %v2054, 0.0
        %v2172 = vmax.f32 %v2057, 0.0
        %v2173 = vmax.f32 %v2062, 0.0
        %v2174 = vmax.f32 %v2065, 0.0
        %v2175 = vmax.f32 %v2070, 0.0
        %v2176 = vmax.f32 %v2073, 0.0
        %v2177 = vmax.f32 %v2078, 0.0
        %v2178 = vmax.f32 %v2081, 0.0
        %v2179 = vmax.f32 %v2086, 0.0
        %v2180 = vmax.f32 %v2089, 0.0
        %v2181 = vmax.f32 %v2094, 0.0
        %v2182 = vmax.f32 %v2097, 0.0
        %v2183 = vmax.f32 %v2102, 0.0
        %v2184 = vmax.f32 %v2105, 0.0
        %v2185 = vmax.f32 %v2110, 0.0
        %v2186 = vmax.f32 %v2113, 0.0
        %v2187 = vmax.f32 %v2118, 0.0
        %v2188 = vmax.f32 %v2121, 0.0
        %v2189 = vmax.f32 %v2126, 0.0
        %v2190 = vmax.f32 %v2129, 0.0
        %v2191 = vmax.f32 %v2134, 0.0
        %v2192 = vmax.f32 %v2137, 0.0
        %v2193 = vmax.f32 %v2142, 0.0
        %v2194 = vmax.f32 %v2145, 0.0
        %v2195 = vmax.f32 %v2150, 0.0
        %v2196 = vpack.c.bf16 %v2156, %v2155
        %v2197 = vpack.c.bf16 %v2158, %v2157
        %v2198 = vpack.c.bf16 %v2160, %v2159
        %v2199 = vpack.c.bf16 %v2162, %v2161
        %v2200 = vpack.c.bf16 %v2164, %v2163
        %v2201 = vpack.c.bf16 %v2166, %v2165
        %v2202 = vpack.c.bf16 %v2168, %v2167
        %v2203 = vpack.c.bf16 %v2170, %v2169
        %v2204 = vpack.c.bf16 %v2172, %v2171
        %v2205 = vpack.c.bf16 %v2174, %v2173
        %v2206 = vpack.c.bf16 %v2176, %v2175
        %v2207 = vpack.c.bf16 %v2178, %v2177
        %v2208 = vpack.c.bf16 %v2180, %v2179
        %v2209 = vpack.c.bf16 %v2182, %v2181
        %v2210 = vpack.c.bf16 %v2184, %v2183
        %v2211 = vpack.c.bf16 %v2186, %v2185
        %v2212 = vpack.c.bf16 %v2188, %v2187
        %v2213 = vpack.c.bf16 %v2190, %v2189
        %v2214 = vpack.c.bf16 %v2192, %v2191
        %v2215 = vpack.c.bf16 %v2194, %v2193
        %v2216 = vpack.c.bf16 %v2195, %v2195
        %v2217 = vld [vmem:[%s2] sm:$0xf]
        %vm2218 = vcmask 31744
        %v2220 = vsel %vm2218, %v2217, 0
        %v2223 = vsel %vm2218, %v2196, 0
        %v2226 = vsel %vm2218, %v2197, 0
        %v2229 = vsel %vm2218, %v2198, 0
        %v2232 = vsel %vm2218, %v2199, 0
        %v2235 = vsel %vm2218, %v2200, 0
        %v2238 = vsel %vm2218, %v2201, 0
        %v2241 = vsel %vm2218, %v2202, 0
        %v2244 = vsel %vm2218, %v2203, 0
        %v2247 = vsel %vm2218, %v2204, 0
        %v2250 = vsel %vm2218, %v2205, 0
        %v2253 = vsel %vm2218, %v2206, 0
        %v2256 = vsel %vm2218, %v2207, 0
        %v2259 = vsel %vm2218, %v2208, 0
        %v2262 = vsel %vm2218, %v2209, 0
        %v2265 = vsel %vm2218, %v2210, 0
        %v2268 = vsel %vm2218, %v2211, 0
        %v2271 = vsel %vm2218, %v2212, 0
        %v2274 = vsel %vm2218, %v2213, 0
        %v2277 = vsel %vm2218, %v2214, 0
        %v2280 = vsel %vm2218, %v2215, 0
        %v2283 = vsel %vm2218, %v2216, 0
        %2285 = vmatprep.subr.bf16.mxu0 0
        %2286 = vmatpush1.bf16.xpose.msra.mxu0 %v2244
        %2287 = vmatprep.subr.bf16.mxu0 0
        %2288 = vmatpush1.bf16.xpose.msra.mxu0 %v2241
        %2289 = vmatprep.subr.bf16.mxu0 0
        %2290 = vmatpush1.bf16.xpose.msra.mxu0 %v2238
        %2291 = vmatprep.subr.bf16.mxu0 0
        %2292 = vmatpush1.bf16.xpose.msra.mxu0 %v2235
        %2293 = vmatprep.subr.bf16.mxu0 0
        %2294 = vmatpush1.bf16.xpose.msra.mxu0 %v2232
        %2295 = vmatprep.subr.bf16.mxu0 0
        %2296 = vmatpush1.bf16.xpose.msra.mxu0 %v2229
        %2297 = vmatprep.subr.bf16.mxu0 0
        %2298 = vmatpush1.bf16.xpose.msra.mxu0 %v2226
        %2299 = vmatprep.subr.bf16.mxu0 0
        %2300 = vmatpush1.bf16.xpose.msra.mxu0 %v2223
        %2301 = vmatprep.subr.bf16.mxu0 0
        %2302 = vmatpush2.bf16.xpose.msra.mxu0 %v2268
        %2303 = vmatprep.subr.bf16.mxu0 0
        %2304 = vmatpush2.bf16.xpose.msra.mxu0 %v2265
        %2305 = vmatprep.subr.bf16.mxu0 0
        %2306 = vmatpush2.bf16.xpose.msra.mxu0 %v2262
        %2307 = vmatprep.subr.bf16.mxu0 0
        %2308 = vmatpush2.bf16.xpose.msra.mxu0 %v2259
        %2309 = vmatprep.subr.bf16.mxu0 0
        %2310 = vmatpush2.bf16.xpose.msra.mxu0 %v2256
        %2311 = vmatprep.subr.bf16.mxu0 0
        %2312 = vmatpush2.bf16.xpose.msra.mxu0 %v2253
        %2313 = vmatprep.subr.bf16.mxu0 0
        %2314 = vmatpush2.bf16.xpose.msra.mxu0 %v2250
        %2315 = vmatprep.subr.bf16.mxu0 0
        %2316 = vmatpush2.bf16.xpose.msra.mxu0 %v2247
        %2317 = vmatprep.mubr.bf16.mxu0 0
        %2318 = vmatmul.mubr.bf16.gmra.mxu0 %v2220
        %v2319 = vpop.f32.mrf.mxu0
        %v2320 = vadd.f32 0.0, %v2319
        %v2321 = vpop.f32.mrf.mxu0
        %v2322 = vadd.f32 0.0, %v2321
        %v2323 = vpop.f32.mrf.mxu0
        %v2324 = vpop.f32.mrf.mxu0
        %2325 = vdwg.mxu0
        %2326 = vmatprep.subr.bf16.mxu0 0
        %2327 = vmatpush1.bf16.xpose.msra.mxu0 0
        %2328 = vmatprep.subr.bf16.mxu0 0
        %2329 = vmatpush1.bf16.xpose.msra.mxu0 0
        %2330 = vmatprep.subr.bf16.mxu0 0
        %2331 = vmatpush1.bf16.xpose.msra.mxu0 0
        %2332 = vmatprep.subr.bf16.mxu0 0
        %2333 = vmatpush1.bf16.xpose.msra.mxu0 %v2283
        %2334 = vmatprep.subr.bf16.mxu0 0
        %2335 = vmatpush1.bf16.xpose.msra.mxu0 %v2280
        %2336 = vmatprep.subr.bf16.mxu0 0
        %2337 = vmatpush1.bf16.xpose.msra.mxu0 %v2277
        %2338 = vmatprep.subr.bf16.mxu0 0
        %2339 = vmatpush1.bf16.xpose.msra.mxu0 %v2274
        %2340 = vmatprep.subr.bf16.mxu0 0
        %2341 = vmatpush1.bf16.xpose.msra.mxu0 %v2271
        %2342 = vmatprep.subr.bf16.mxu0 0
        %2343 = vmatpush2.bf16.xpose.msra.mxu0 0
        %2344 = vmatprep.subr.bf16.mxu0 0
        %2345 = vmatpush2.bf16.xpose.msra.mxu0 0
        %2346 = vmatprep.subr.bf16.mxu0 0
        %2347 = vmatpush2.bf16.xpose.msra.mxu0 0
        %2348 = vmatprep.subr.bf16.mxu0 0
        %2349 = vmatpush2.bf16.xpose.msra.mxu0 0
        %2350 = vmatprep.subr.bf16.mxu0 0
        %2351 = vmatpush2.bf16.xpose.msra.mxu0 0
        %2352 = vmatprep.subr.bf16.mxu0 0
        %2353 = vmatpush2.bf16.xpose.msra.mxu0 0
        %2354 = vmatprep.subr.bf16.mxu0 0
        %2355 = vmatpush2.bf16.xpose.msra.mxu0 0
        %2356 = vmatprep.subr.bf16.mxu0 0
        %2357 = vmatpush2.bf16.xpose.msra.mxu0 0
        %2358 = vmatprep.mubr.bf16.mxu0 0
        %2359 = vmatmul.mubr.bf16.gmra.mxu0 %v2220
        %v2360 = vpop.f32.mrf.mxu0
        %v2361 = vadd.f32 0.0, %v2360
        %v2362 = vpop.f32.mrf.mxu0
        %v2363 = vpop.f32.mrf.mxu0
        %v2364 = vpop.f32.mrf.mxu0
        %2365 = vdwg.mxu0
        %2366 = vst [vmem:[%s163] sm:$0xff] %v2320
        %2367 = vst [vmem:[%s163 + $0x8] sm:$0xff] %v2322
        %vm2368 = vcmask 556032
        %2369 = vst.msk [vmem:[%s163 + $0x10] sm:$0xff] %vm2368, %v2361
        %s2370 = sand.u32 %s93, 1
        %s2371 = scalar_lea.sflag [#allocation4], %s2370
        %s2372 = sand.u32 %s93, 1
        %s2373 = smul.addr %s2372, 24
        %s2374 = scalar_lea.vmem [#allocation3], %s2373
        // Predicated region
        $region33: #{tpu_custom_call.1} parent=31 // pred_check
          %p2375 = pneg %p103
        $region34: #{tpu_custom_call.1} parent=31 // pred_check_branch
          %2377 = sbr.rel (%p2375) target = $region36
        $region35: #{tpu_custom_call.1} parent=31 // pred_region
          %s2379 = ssub.s32 384, 384
          %2380 = vsyncadd %s2371, %s2379
          %s2381 = smul.addr %s17, 3
          %s2382 = smul.addr %s2381, 128
          %s2383 = scalar_lea.hbm %s3, %s2382
          %s2385 = sshll.u32 %s2374, 4
          %s2386 = int_to_ptr.vmem [resolvable:$true] %s2385
          %2388 = dma.vmem_to_hbm [thread:$0]  %s2386, 384, %s2383, %s2371
        $region36: #{tpu_custom_call.1} parent=31 // pred_fallthru
          _
      $region32: #{tpu_custom_call.1} parent=5 // pred_fallthru
        _
      %p2389 = scmp.le.s32.totalorder 2, %s12
      // Predicated region
      $region37: #{tpu_custom_call.1} parent=5 // pred_check
        %p2390 = pneg %p2389
      $region38: #{tpu_custom_call.1} parent=5 // pred_check_branch
        %2392 = sbr.rel (%p2390) target = $region40
      $region39: #{tpu_custom_call.1} parent=5 // pred_region
        %s2393 = ssub.s32 %s12, 2
        // Predicated region
        $region41: #{tpu_custom_call.1} parent=39 // pred_check
          %p2394 = pneg %p109
        $region42: #{tpu_custom_call.1} parent=39 // pred_check_branch
          %2396 = sbr.rel (%p2394) target = $region44
        $region43: #{tpu_custom_call.1} parent=39 // pred_region
          %s2397 = sand.u32 %s94, 1
          %s2398 = scalar_lea.sflag [#allocation4], %s2397
          %s2399 = sand.u32 %s94, 1
          %s2400 = smul.addr %s2399, 24
          %s2401 = scalar_lea.vmem [#allocation3], %s2400
          %2402 = dma.done %s2398, 384
        $region44: #{tpu_custom_call.1} parent=39 // pred_fallthru
          _
      $region40: #{tpu_custom_call.1} parent=5 // pred_fallthru
        _
    $region6: #{tpu_custom_call.1} parent=1 // loop_footer
      %s16 = sadd.s32 1, %s12
    $region7: #{tpu_custom_call.1} parent=1 // loop_footer_branch
      %11 = sbr.rel target = $region3
    $region8: #{tpu_custom_call.1} parent=1 // loop_exit
      _
    %2403 = vsyncpa [#allocation4], 1
    %s2404 = scalar_lea.sflag [#allocation4], 1
    %2405 = vsyncpa %s2404, 1

</llo_original>
